<compile_context>
chip_gen: v7x
topology: tpu7x:2x2x1
jax: 0.10.0
libtpu: 0.0.40
codegen_flags: <defaults>
</compile_context>

<pallas_src>
import functools
import math

import jax
import jax.numpy as jnp
from jax.experimental import pallas as pl
from jax.experimental.pallas import tpu as pltpu


# --------------------------------------------------------------------------
# Pallas kernel: fused per-tap-row matmul  y = relu(x @ w[ky] + bias)
# --------------------------------------------------------------------------

def _deconv_tap_kernel(x_ref, w_ref, b_ref, o_ref, *, apply_epilogue):
    # grid = (m, ky); both axes independent ("parallel"), no reduction axis.
    ky = pl.program_id(1)
    y = jnp.dot(x_ref[...], w_ref[ky],                 # (tm,Cin)@(Cin,ncol)
                preferred_element_type=jnp.float32)
    if apply_epilogue:                                  # bias + ReLU, f32
        y = jnp.maximum(y + b_ref[...], 0.0)
    # f32 reshape (free relabel for W % 8 == 0), then cast at the store only.
    o_ref[...] = y.reshape(o_ref.shape).astype(o_ref.dtype)


def _round_up(a, b):
    return (a + b - 1) // b * b


def _choose_tile_nh(NH, W, per_nh_row_bytes, kH,
                    vmem_budget=12 << 20, max_rows=4096):
    """Pick tile_nh (image rows per M tile): tm = tile_nh*W is 16-aligned,
    fits the VMEM budget, and divides NH when possible (no HBM pad pass)."""
    step = 16 // math.gcd(W, 16)                 # tile_nh granularity
    rows_fit = max(1, vmem_budget // max(per_nh_row_bytes, 1))
    target = min(rows_fit, max(1, max_rows // max(W, 1)))
    target = max(step, (target // step) * step)

    if NH <= target:
        tile_nh = _round_up(NH, step)
    else:
        tile_nh = None
        cand = target
        while cand >= step:                      # prefer a divisor of NH
            if NH % cand == 0:
                tile_nh = cand
                break
            cand -= step
        if tile_nh is None:
            tile_nh = target
    NH_p = _round_up(NH, tile_nh)
    num_m = NH_p // tile_nh
    # v7x megacore: guarantee >= 2 parallel grid iterations.
    if kH == 1 and num_m == 1 and NH > step:
        tile_nh = _round_up((NH + 1) // 2, step)
        NH_p = _round_up(NH, tile_nh)
        num_m = NH_p // tile_nh
    return tile_nh, NH_p, num_m


def deconv_tap_matmul(x_nhwc, w3, bias_row, *, apply_epilogue):
    """All k*k transposed-conv taps as one grid-tiled Pallas matmul.

    x_nhwc  : (N, H, W, Cin) bfloat16     activations (cast fused w/ transpose)
    w3      : (kH, Cin, kW*Cout) bfloat16 tap-major weights (BN scale folded)
    bias_row: (kW*Cout,) float32          per-output-column bias
    returns : (N*H, kH, W, kW*Cout) bf16/f32 per-tap contributions (lane-dense)
    """
    N, H, W, Cin = x_nhwc.shape
    kH, _, ncol = w3.shape
    NH = N * H

    # bf16 output only when the store is cleanly tile-aligned (NLT config);
    # otherwise keep the proven f32 store path.
    taps_dtype = jnp.bfloat16 if (W % 16 == 0 and ncol % 128 == 0) else jnp.float32
    out_b = 2 if taps_dtype == jnp.bfloat16 else 4

    # ---- tiling (VMEM-budget driven, double-buffered x + out blocks) --------
    per_nh_row = 2 * W * (Cin * 2 + ncol * out_b)
    tile_nh, NH_p, num_m = _choose_tile_nh(NH, W, per_nh_row, kH)
    tm = tile_nh * W

    # ---- operands: no Cin padding, no separate cast pass ---------------------
    x2 = x_nhwc.reshape(NH * W, Cin)
    if NH_p != NH:                               # rare: pad rows only if needed
        x2 = jnp.pad(x2, ((0, (NH_p - NH) * W), (0, 0)))
    b2 = bias_row.astype(jnp.float32).reshape(1, ncol)

    w_bytes = 2 * kH * Cin * ncol * 2            # full-extent weight buffer (x2)
    vmem_need = 2 * tm * Cin * 2 + 2 * tm * ncol * out_b + w_bytes + 2 * ncol * 4
    vmem_limit = int(min(max(2 * vmem_need + (4 << 20), 32 << 20), 48 << 20))

    grid = (num_m, kH)
    flops = 2 * NH_p * W * Cin * kH * ncol
    bytes_accessed = int(x2.size * x2.dtype.itemsize + w3.size * 2 + b2.size * 4
                         + NH_p * kH * W * ncol * out_b)

    out = pl.pallas_call(
        functools.partial(_deconv_tap_kernel, apply_epilogue=apply_epilogue),
        out_shape=jax.ShapeDtypeStruct((NH_p, kH, W, ncol), taps_dtype),
        grid_spec=pltpu.PrefetchScalarGridSpec(
            num_scalar_prefetch=0,
            grid=grid,
            in_specs=[
                # x block index ignores ky -> fetched once per M tile, reused.
                pl.BlockSpec((tm, Cin), lambda m, ky: (m, 0)),
                # full-extent weights: one DMA, resident for the whole grid.
                pl.BlockSpec((kH, Cin, ncol), lambda m, ky: (0, 0, 0)),
                pl.BlockSpec((1, ncol), lambda m, ky: (0, 0)),
            ],
            out_specs=pl.BlockSpec((tile_nh, 1, W, ncol),
                                   lambda m, ky: (m, ky, 0, 0)),
        ),
        compiler_params=pltpu.CompilerParams(
            dimension_semantics=("parallel", "parallel"),
            vmem_limit_bytes=vmem_limit),
        cost_estimate=pl.CostEstimate(flops=flops, transcendentals=0,
                                      bytes_accessed=bytes_accessed),
    )(x2, w3, b2)

    return out[:NH]                               # drop row padding (if any)


# --------------------------------------------------------------------------
# BasicDeconv forward (NCHW in / NCHW out, like the PyTorch module)
# --------------------------------------------------------------------------

def _instance_norm_relu(y_nhwc, eps):
    # nn.InstanceNorm2d default: affine=False, per-sample/channel spatial stats.
    # TODO(synk): InstanceNorm statistics epilogue runs in XLA, not fused.
    m = jnp.mean(y_nhwc, axis=(1, 2), keepdims=True)
    v = jnp.var(y_nhwc, axis=(1, 2), keepdims=True)
    return jnp.maximum((y_nhwc - m) * jax.lax.rsqrt(v + eps), 0.0)


def basic_deconv_forward(x_nchw, params, *, kernel_size, stride=1, use_bn='none',
                         out_dtype=jnp.bfloat16):
    N, Cin, H, W = x_nchw.shape
    k, s = kernel_size, stride
    w = params['w']                               # (Cin, Cout, k, k)  PyTorch layout
    Cout = w.shape[1]
    eps = 1e-5

    if use_bn == 'bn':
        # TODO(synk): eval-mode BatchNorm only (running stats folded into
        # weights/bias); train-mode batch statistics are not reproduced.
        scale = params['gamma'] / jnp.sqrt(params['var'] + eps)
        w_eff = w * scale[None, :, None, None]    # fold BN scale into weights
        bias = params['beta'] - params['mean'] * scale
    elif use_bn == 'none':
        w_eff = w
        bias = params['b']                        # ConvTranspose bias (bias=True)
    elif use_bn == 'in':
        w_eff = w
        bias = jnp.zeros((Cout,), jnp.float32)    # bias=False when norm present
    else:
        raise ValueError(use_bn)

    # NCHW -> NHWC with the bf16 cast fused into the same XLA pass.
    x = jnp.transpose(x_nchw, (0, 2, 3, 1)).astype(jnp.bfloat16)
    # Tap-major weight: w3[ky, cin, kx*Cout + cout] = w_eff[cin, cout, ky, kx]
    w3 = jnp.transpose(w_eff, (2, 0, 3, 1)).reshape(k, Cin, k * Cout)
    w3 = w3.astype(jnp.bfloat16)
    bias_row = jnp.tile(bias.astype(jnp.float32), k)

    fuse_epilogue = (k == s) and (use_bn != 'in')
    taps = deconv_tap_matmul(x, w3, bias_row, apply_epilogue=fuse_epilogue)
    taps = taps.reshape(N, H, k, W, k, Cout)      # pure reshape, no transpose

    if k == s:                                    # non-overlapping pixel shuffle
        y = taps.reshape(N, H * k, W * k, Cout)   # free reshape
        if use_bn == 'in':
            y = _instance_norm_relu(y.astype(jnp.float32), eps)
    else:
        # General stride != kernel_size: overlapping/gapped scatter-add of taps.
        # TODO(synk): this scatter-add + epilogue runs in XLA, not fused in Pallas.
        OH, OW = (H - 1) * s + k, (W - 1) * s + k
        y = jnp.zeros((N, OH, OW, Cout), jnp.float32)
        t32 = taps.astype(jnp.float32)
        for ky in range(k):
            for kx in range(k):
                y = y.at[:, ky:ky + (H - 1) * s + 1:s,
                         kx:kx + (W - 1) * s + 1:s, :].add(t32[:, :, ky, :, kx, :])
        if use_bn == 'in':
            y = _instance_norm_relu(y, eps)
        else:
            y = jnp.maximum(y + bias.astype(jnp.float32)[None, None, None, :], 0.0)

    return jnp.transpose(y, (0, 3, 1, 2)).astype(out_dtype)   # NHWC -> NCHW


# --------------------------------------------------------------------------
# Synthetic parameters + pure-XLA f32 reference (for verification)
# --------------------------------------------------------------------------

def make_params(key, cin, cout, k, use_bn):
    ks = jax.random.split(key, 6)
    w = jax.random.normal(ks[0], (cin, cout, k, k), jnp.float32)
    w = w * (2.0 / (cin * k * k)) ** 0.5
    p = {'w': w}
    if use_bn == 'bn':
        p['gamma'] = 1.0 + 0.1 * jax.random.normal(ks[1], (cout,), jnp.float32)
        p['beta'] = 0.05 * jax.random.normal(ks[2], (cout,), jnp.float32)
        p['mean'] = 0.05 * jax.random.normal(ks[3], (cout,), jnp.float32)
        p['var'] = 1.0 + 0.1 * jnp.abs(jax.random.normal(ks[4], (cout,), jnp.float32))
    elif use_bn == 'none':
        p['b'] = 0.05 * jax.random.normal(ks[5], (cout,), jnp.float32)
    return p


def reference_forward(x_nchw, params, *, kernel_size, stride, use_bn):
    """ConvTranspose2d == lhs-dilated conv with spatially flipped kernel."""
    k, s = kernel_size, stride
    w = params['w']
    kern = jnp.transpose(w, (1, 0, 2, 3))[:, :, ::-1, ::-1]   # OIHW, flipped
    z = jax.lax.conv_general_dilated(
        x_nchw, kern, window_strides=(1, 1),
        padding=[(k - 1, k - 1), (k - 1, k - 1)],
        lhs_dilation=(s, s),
        dimension_numbers=('NCHW', 'OIHW', 'NCHW'),
        precision=jax.lax.Precision.HIGHEST)
    eps = 1e-5
    if use_bn == 'bn':
        z = (z - params['mean'][None, :, None, None]) * (
            params['gamma'][None, :, None, None]
            / jnp.sqrt(params['var'][None, :, None, None] + eps))
        z = z + params['beta'][None, :, None, None]
    elif use_bn == 'none':
        z = z + params['b'][None, :, None, None]
    elif use_bn == 'in':
        m = jnp.mean(z, axis=(2, 3), keepdims=True)
        v = jnp.var(z, axis=(2, 3), keepdims=True)
        z = (z - m) / jnp.sqrt(v + eps)
    return jnp.maximum(z, 0.0)


def _check(out, ref, name):
    out32 = jnp.asarray(out, jnp.float32)
    assert bool(jnp.all(jnp.isfinite(out32))), name
    err = float(jnp.max(jnp.abs(out32 - ref)))
    scale = float(jnp.max(jnp.abs(ref))) + 1.0
    assert err <= 0.05 * scale, (name, err, scale)


# --------------------------------------------------------------------------

if __name__ == "__main__":
    root = jax.random.PRNGKey(0)
    kx, kp1, kp2, kp3 = jax.random.split(root, 4)

    # Primary config (as used in NLT's SFC decoder): 2x2 deconv, stride 2, BN.
    # Cout*k = 128 -> lane-dense bf16 output stores.
    x1 = jax.random.normal(kx, (2, 32, 16, 16), jnp.float32)
    p1 = make_params(kp1, 32, 64, 2, 'bn')
    fwd1 = jax.jit(functools.partial(basic_deconv_forward,
                                     kernel_size=2, stride=2, use_bn='bn'))
    out1 = fwd1(x1, p1)
    jax.block_until_ready(out1)
    assert out1.shape == (2, 64, 32, 32), out1.shape
    _check(out1, reference_forward(x1, p1, kernel_size=2, stride=2, use_bn='bn'), "bn")

    # General path: kernel_size != stride (overlapping taps), conv bias, no norm.
    x2 = jax.random.normal(jax.random.fold_in(kx, 1), (1, 16, 8, 8), jnp.float32)
    p2 = make_params(kp2, 16, 8, 3, 'none')
    out2 = jax.jit(functools.partial(basic_deconv_forward,
                                     kernel_size=3, stride=2, use_bn='none'))(x2, p2)
    jax.block_until_ready(out2)
    assert out2.shape == (1, 8, 17, 17), out2.shape
    _check(out2, reference_forward(x2, p2, kernel_size=3, stride=2, use_bn='none'),
           "none_k3s2")

    # InstanceNorm variant.
    x3 = jax.random.normal(jax.random.fold_in(kx, 2), (2, 8, 8, 8), jnp.float32)
    p3 = make_params(kp3, 8, 8, 2, 'in')
    out3 = jax.jit(functools.partial(basic_deconv_forward,
                                     kernel_size=2, stride=2, use_bn='in'))(x3, p3)
    jax.block_until_ready(out3)
    assert out3.shape == (2, 8, 16, 16), out3.shape
    _check(out3, reference_forward(x3, p3, kernel_size=2, stride=2, use_bn='in'), "in")

    print("KERNEL_OK")
</pallas_src>

<mosaic_0001>
module attributes {stable_mosaic.version = 11 : i64} {
  func.func @_deconv_tap_kernel(%arg0: i32, %arg1: i32, %arg2: memref<512x32xbf16, #tpu.memory_space<vmem>>, %arg3: memref<2x32x128xbf16, #tpu.memory_space<vmem>>, %arg4: memref<1x128xf32, #tpu.memory_space<vmem>>, %arg5: memref<32x1x16x128xbf16, #tpu.memory_space<vmem>>) attributes {dimension_semantics = [#tpu.dimension_semantics<parallel>, #tpu.dimension_semantics<parallel>], iteration_bounds = array<i64: 1, 2>, scalar_prefetch = 0 : i64, scratch_operands = 0 : i64, tpu.core_type = #tpu.core_type<tc>, window_params = [{transform_indices = @transform_0, window_bounds = array<i64: 512, 32>}, {pipeline_mode = #tpu.pipeline_mode<synchronous>, transform_indices = @transform_1, window_bounds = array<i64: 2, 32, 128>}, {pipeline_mode = #tpu.pipeline_mode<synchronous>, transform_indices = @transform_2, window_bounds = array<i64: 1, 128>}, {transform_indices = @transform_3, window_bounds = array<i64: 32, 1, 16, 128>}]} {
    %c0 = arith.constant 0 : index
    %c0_0 = arith.constant 0 : index
    %0 = vector.load %arg2[%c0, %c0_0] : memref<512x32xbf16, #tpu.memory_space<vmem>>, vector<512x32xbf16>
    %1 = arith.index_cast %arg1 : i32 to index
    %c0_1 = arith.constant 0 : index
    %c0_2 = arith.constant 0 : index
    %2 = vector.load %arg3[%1, %c0_1, %c0_2] : memref<2x32x128xbf16, #tpu.memory_space<vmem>>, vector<1x32x128xbf16>
    %3 = vector.shape_cast %2 : vector<1x32x128xbf16> to vector<32x128xbf16>
    %cst = arith.constant dense<0.000000e+00> : vector<512x128xf32>
    %4 = tpu.matmul %0, %3, %cst {dimension_numbers = #tpu.dot_dimension_numbers<[1], [0], [0], [1], [0, 0, 1, 1], [], []>} : vector<512x32xbf16>, vector<32x128xbf16>, vector<512x128xf32> -> vector<512x128xf32>
    %c0_3 = arith.constant 0 : index
    %c0_4 = arith.constant 0 : index
    %5 = vector.load %arg4[%c0_3, %c0_4] : memref<1x128xf32, #tpu.memory_space<vmem>>, vector<1x128xf32>
    %6 = vector.broadcast %5 : vector<1x128xf32> to vector<512x128xf32>
    %7 = arith.addf %4, %6 : vector<512x128xf32>
    %cst_5 = arith.constant 0.000000e+00 : f32
    %8 = vector.broadcast %cst_5 : f32 to vector<512x128xf32>
    %9 = arith.maximumf %7, %8 : vector<512x128xf32>
    %10 = vector.shape_cast %9 : vector<512x128xf32> to vector<32x1x16x128xf32>
    %11 = arith.truncf %10 : vector<32x1x16x128xf32> to vector<32x1x16x128xbf16>
    %c0_6 = arith.constant 0 : index
    %c0_7 = arith.constant 0 : index
    %c0_8 = arith.constant 0 : index
    %c0_9 = arith.constant 0 : index
    %12 = vector.load %arg5[%c0_6, %c0_7, %c0_8, %c0_9] : memref<32x1x16x128xbf16, #tpu.memory_space<vmem>>, vector<32x1x16x128xbf16>
    tpu.vector_store %arg5[%c0_6, %c0_7, %c0_8, %c0_9], %11 {strides = array<i32>} : memref<32x1x16x128xbf16, #tpu.memory_space<vmem>>, vector<32x1x16x128xbf16>,
    return
  }
  func.func @transform_0(%arg0: i32, %arg1: i32) -> (i32, i32) {
    %c0_i32 = arith.constant 0 : i32
    %c0_i32_0 = arith.constant 0 : i32
    return %arg0, %c0_i32 : i32, i32
  }
  func.func @transform_1(%arg0: i32, %arg1: i32) -> (i32, i32, i32) {
    %c0_i32 = arith.constant 0 : i32
    %c0_i32_0 = arith.constant 0 : i32
    %c0_i32_1 = arith.constant 0 : i32
    %c0_i32_2 = arith.constant 0 : i32
    return %c0_i32, %c0_i32_0, %c0_i32_1 : i32, i32, i32
  }
  func.func @transform_2(%arg0: i32, %arg1: i32) -> (i32, i32) {
    %c0_i32 = arith.constant 0 : i32
    %c0_i32_0 = arith.constant 0 : i32
    %c0_i32_1 = arith.constant 0 : i32
    return %c0_i32, %c0_i32_0 : i32, i32
  }
  func.func @transform_3(%arg0: i32, %arg1: i32) -> (i32, i32, i32, i32) {
    %c0_i32 = arith.constant 0 : i32
    %c0_i32_0 = arith.constant 0 : i32
    %c0_i32_1 = arith.constant 0 : i32
    return %arg0, %arg1, %c0_i32, %c0_i32_0 : i32, i32, i32, i32
  }
}

</mosaic_0001>

<llo_original>
// kernel: tile.8
$region0: #{tile.8}
  #allocation0 [shape = 's32[1]{0}', space=sflag, size = 0x4, scoped, tag = 'scoped memory for tile.8']
  %s0 = inlined_call_operand.vmem [shape: f32[64], index: 0, kind: input, shape index: {}]
  %s1 = inlined_call_operand.vmem [shape: f32[2,64], index: 1, kind: output, shape index: {}]
  // Predicated region
  $region2: #{tile.8} parent=0 // pred_check
    _
  $region3: #{tile.8} parent=0 // pred_check_branch
    %3 = sbr.rel (0) target = $region5
  $region4: #{tile.8} parent=0 // pred_region
    _
  $region5: #{tile.8} parent=0 // pred_fallthru
    _
  %v4 = vld [vmem:[%s0] ss:$0 sm:$0xff]
  %5 = vst [vmem:[%s1] sm:$0x3] %v4

// kernel: tile.9
$region0: #{tile.9}
  %s0 = inlined_call_operand.vmem [shape: f32[2,64], index: 0, kind: input, shape index: {}]
  %s1 = inlined_call_operand.vmem [shape: f32[1,128], index: 1, kind: output, shape index: {}]
  $region1: #{tile.9} parent=0
    #allocation0 [shape = 'u8[4096]{0}', space=vmem, size = 0x1000, scoped, tag = 'scoped mem for output reshape']
    #allocation1 [shape = 'u8[4096]{0}', space=vmem, size = 0x1000, scoped, tag = 'scoped mem for input reshape']
    %s3 = sshllo.u32 0, 2
    %v4 = vld [vmem:[%s0] sm:%s3]
    %5 = vst [vmem:[#allocation1] sm:%s3] %v4
    %v6 = vld [vmem:[#allocation1] sm:$0x1]
    %vm7 = vcmask 523264
    %8 = vst.msk [vmem:[#allocation0] sm:$0x1] %vm7, %v6
    %s9 = scalar_lea.vmem [#allocation1], 1
    %v10 = vld [vmem:[%s9] sm:$0x1]
    %11 = vrot.lane.b32.xlu0 %v10, 64
    %v12 = vpop.permute.xlu0 %11
    %vm13 = vcmask 1048064
    %14 = vst.msk [vmem:[#allocation0] sm:$0x1] %vm13, %v12
    %s16 = sshllo.u32 0, 1
    %v18 = vld [vmem:[#allocation0] sm:%s16]
    %s19 = sshllo.u32 0, 1
    %20 = vst [vmem:[%s1] sm:%s19] %v18

// kernel: basic_deconv_forward.1
$region0: #{basic_deconv_forward.1}
  #allocation0 [shape = 'u32[]', space=smem, size = 0x4, offset = 0x4, fixed_abs, tag = 'smem constant byte address 0x4 - core index']
  #allocation1 [shape = 'u32[144,128]{1,0:T(1,128)}', space=vmem, size = 0x12000, scoped, tag = 'internal scratch']
  %s0 = inlined_call_operand.vmem [shape: bf16[512,32], index: 0, kind: input, shape index: {}]
  %s1 = inlined_call_operand.vmem [shape: bf16[2,32,128], index: 1, kind: input, shape index: {}]
  %s2 = inlined_call_operand.vmem [shape: f32[1,128], index: 2, kind: input, shape index: {}]
  %s3 = inlined_call_operand.vmem [shape: bf16[32,2,16,128], index: 3, kind: output, shape index: {}]
  %s4 = sld [smem:[#allocation0]]
  $region82: #{basic_deconv_forward.1} parent=0
    _
  %s6 = ssub.s32 1, %s4
  %s7 = scalar_select 0, %s6, %s4
  $region1: #{basic_deconv_forward.1} parent=0
    #allocation2 [shape = 'u8[262144]{0}', space=vmem, size = 0x40000, scoped, tag = 'output window, operand 0']
    loop: start=0, step=1, limit=4
    $region2: #{basic_deconv_forward.1} parent=1 // loop_pre_header
      _
    $region3: #{basic_deconv_forward.1} parent=1 // loop_header
      %s9 = sphi 0, %s13
      %p10 = scmp.ge.s32.totalorder %s9, 4
      %s16 = sphi 0, %s28
      %s17 = sphi 0, %s24
      %s18 = sphi 0, %s16
      %s19 = sphi 0, %s17
      %s20 = sphi 0, %s18
      %s21 = sphi 0, %s19
      %s31 = sphi 0, %s33
      %s34 = sphi 0, %s31
      %s35 = sphi 0, %s34
      %s51 = sphi 0, %s35
      %s55 = sphi 0, %s55
      %s57 = sphi 0, %s55
      %s58 = sphi 0, %s57
      %s72 = sphi 0, %s58
      %s76 = sphi 0, %s76
      %s78 = sphi 0, %s76
      %s79 = sphi 0, %s78
      %s93 = sphi 0, %s79
      %s101 = sphi 0, %s103
      %s104 = sphi 0, %s101
      %s105 = sphi 0, %s104
      %s121 = sphi 0, %s105
    $region4: #{basic_deconv_forward.1} parent=1 // loop_header_branch
      %12 = sbr.rel (%p10) target = $region8
    $region5: #{basic_deconv_forward.1} parent=1 // loop_body
      %s14 = ssub.s32 %s9, 1
      %s15 = ssub.s32 %s9, 2
      %s22 = sadd.s32 1, %s17
      %p23 = scmp.ge.s32.totalorder %s22, 2
      %s24 = scalar_select %p23, 0, %s22
      %s25 = sadd.s32 1, %s16
      %s26 = scalar_select %p23, %s25, %s16
      %p27 = scmp.ge.s32.totalorder %s26, 1
      %s28 = scalar_select %p27, 0, %s26
      %s29 = ssub.s32 %s16, %s28
      %p30 = scmp.eq.s32.totalorder %s29, 0
      %s32 = sadd.s32 %s31, 1
      %s33 = scalar_select %p30, %s31, %s32
      %p36 = pneg %p30
      %p37 = scmp.eq.s32.totalorder %s9, 1
      %p38 = por %p36, %p37
      %p39 = scmp.ne.s32.totalorder %s31, %s34
      %p40 = scmp.eq.s32.totalorder %s9, 0
      %p41 = por %p39, %p40
      %p42 = scmp.ne.s32.totalorder %s31, %s34
      %p43 = scmp.eq.s32.totalorder %s14, 1
      %p44 = por %p42, %p43
      %p45 = scmp.ne.s32.totalorder %s34, %s35
      %p46 = scmp.eq.s32.totalorder %s14, 0
      %p47 = por %p45, %p46
      %p48 = scmp.ne.s32.totalorder %s34, %s35
      %p49 = scmp.eq.s32.totalorder %s15, 1
      %p50 = por %p48, %p49
      %p52 = scmp.ne.s32.totalorder %s35, %s51
      %p53 = scmp.eq.s32.totalorder %s15, 0
      %p54 = por %p52, %p53
      %s56 = sadd.s32 %s55, 1
      %p59 = scmp.eq.s32.totalorder %s9, 1
      %p60 = scmp.ne.s32.totalorder %s55, %s57
      %p61 = scmp.eq.s32.totalorder %s9, 0
      %p62 = por %p60, %p61
      %p63 = scmp.ne.s32.totalorder %s55, %s57
      %p64 = scmp.eq.s32.totalorder %s14, 1
      %p65 = por %p63, %p64
      %p66 = scmp.ne.s32.totalorder %s57, %s58
      %p67 = scmp.eq.s32.totalorder %s14, 0
      %p68 = por %p66, %p67
      %p69 = scmp.ne.s32.totalorder %s57, %s58
      %p70 = scmp.eq.s32.totalorder %s15, 1
      %p71 = por %p69, %p70
      %p73 = scmp.ne.s32.totalorder %s58, %s72
      %p74 = scmp.eq.s32.totalorder %s15, 0
      %p75 = por %p73, %p74
      %s77 = sadd.s32 %s76, 1
      %p80 = scmp.eq.s32.totalorder %s9, 1
      %p81 = scmp.ne.s32.totalorder %s76, %s78
      %p82 = scmp.eq.s32.totalorder %s9, 0
      %p83 = por %p81, %p82
      %p84 = scmp.ne.s32.totalorder %s76, %s78
      %p85 = scmp.eq.s32.totalorder %s14, 1
      %p86 = por %p84, %p85
      %p87 = scmp.ne.s32.totalorder %s78, %s79
      %p88 = scmp.eq.s32.totalorder %s14, 0
      %p89 = por %p87, %p88
      %p90 = scmp.ne.s32.totalorder %s78, %s79
      %p91 = scmp.eq.s32.totalorder %s15, 1
      %p92 = por %p90, %p91
      %p94 = scmp.ne.s32.totalorder %s79, %s93
      %p95 = scmp.eq.s32.totalorder %s15, 0
      %p96 = por %p94, %p95
      %s97 = ssub.s32 %s16, %s28
      %s98 = ssub.s32 %s17, %s24
      %s99 = sor.u32 %s97, %s98
      %p100 = scmp.eq.s32.totalorder %s99, 0
      %s102 = sadd.s32 %s101, 1
      %s103 = scalar_select %p100, %s101, %s102
      %p106 = pneg %p100
      %p107 = scmp.eq.s32.totalorder %s9, 1
      %p108 = por %p106, %p107
      %p109 = scmp.ne.s32.totalorder %s101, %s104
      %p110 = scmp.eq.s32.totalorder %s9, 0
      %p111 = por %p109, %p110
      %p112 = scmp.ne.s32.totalorder %s101, %s104
      %p113 = scmp.eq.s32.totalorder %s14, 1
      %p114 = por %p112, %p113
      %p115 = scmp.ne.s32.totalorder %s104, %s105
      %p116 = scmp.eq.s32.totalorder %s14, 0
      %p117 = por %p115, %p116
      %p118 = scmp.ne.s32.totalorder %s104, %s105
      %p119 = scmp.eq.s32.totalorder %s15, 1
      %p120 = por %p118, %p119
      %p122 = scmp.ne.s32.totalorder %s105, %s121
      %p123 = scmp.eq.s32.totalorder %s15, 0
      %p124 = por %p122, %p123
      %p125 = scmp.le.s32.totalorder 1, %s9
      %p126 = scmp.lt.s32.totalorder %s9, 3
      %p127 = pnand %p125, %p126
      %p128 = pneg %p127
      // Predicated region
      $region9: #{basic_deconv_forward.1} parent=5 // pred_check
        _
      $region10: #{basic_deconv_forward.1} parent=5 // pred_check_branch
        %130 = sbr.rel (%p127) target = $region12
      $region11: #{basic_deconv_forward.1} parent=5 // pred_region
        %s131 = ssub.s32 %s9, 1
        // Predicated region
        $region13: #{basic_deconv_forward.1} parent=11 // pred_check
          %p132 = pneg %p47
        $region14: #{basic_deconv_forward.1} parent=11 // pred_check_branch
          %134 = sbr.rel (%p132) target = $region16
        $region15: #{basic_deconv_forward.1} parent=11 // pred_region
          %s135 = smul.u32 64, %s18
          %p136 = scmp.lt.s32.totalorder %s135, 63
          %s137 = scalar_select %p136, %s135, 63
          %s138 = smul.addr %s137, 4
          %s139 = scalar_lea.vmem %s0, %s138
          %s140 = smul.u32 64, %s18
        $region16: #{basic_deconv_forward.1} parent=11 // pred_fallthru
          _
        // Predicated region
        $region17: #{basic_deconv_forward.1} parent=11 // pred_check
          %p141 = pneg %p68
        $region18: #{basic_deconv_forward.1} parent=11 // pred_check_branch
          %143 = sbr.rel (%p141) target = $region20
        $region19: #{basic_deconv_forward.1} parent=11 // pred_region
          _
        $region20: #{basic_deconv_forward.1} parent=11 // pred_fallthru
          _
        // Predicated region
        $region21: #{basic_deconv_forward.1} parent=11 // pred_check
          %p144 = pneg %p89
        $region22: #{basic_deconv_forward.1} parent=11 // pred_check_branch
          %146 = sbr.rel (%p144) target = $region24
        $region23: #{basic_deconv_forward.1} parent=11 // pred_region
          _
        $region24: #{basic_deconv_forward.1} parent=11 // pred_fallthru
          _
      $region12: #{basic_deconv_forward.1} parent=5 // pred_fallthru
        _
      %p147 = scmp.lt.s32.totalorder %s9, 2
      // Predicated region
      $region25: #{basic_deconv_forward.1} parent=5 // pred_check
        %p148 = pneg %p147
      $region26: #{basic_deconv_forward.1} parent=5 // pred_check_branch
        %150 = sbr.rel (%p148) target = $region28
      $region27: #{basic_deconv_forward.1} parent=5 // pred_region
        _
      $region28: #{basic_deconv_forward.1} parent=5 // pred_fallthru
        _
      %p151 = scmp.le.s32.totalorder 1, %s9
      %p152 = scmp.lt.s32.totalorder %s9, 3
      %p153 = pnand %p151, %p152
      %p154 = pneg %p153
      // Predicated region
      $region29: #{basic_deconv_forward.1} parent=5 // pred_check
        _
      $region30: #{basic_deconv_forward.1} parent=5 // pred_check_branch
        %156 = sbr.rel (%p153) target = $region32
      $region31: #{basic_deconv_forward.1} parent=5 // pred_region
        %s157 = ssub.s32 %s9, 1
        %s158 = smul.u32 64, %s18
        %p159 = scmp.lt.s32.totalorder %s158, 63
        %s160 = scalar_select %p159, %s158, 63
        %s161 = smul.addr %s160, 4
        %s162 = scalar_lea.vmem %s0, %s161
        %p163 = pneg %p47
        %p164 = pneg %p44
        %p165 = pneg %p68
        %p166 = pneg %p65
        %p167 = pneg %p89
        %p168 = pneg %p86
        %p169 = pneg %p117
        %p170 = pneg %p114
        %s171 = sand.u32 %s104, 1
        %s172 = sand.u32 %s104, 1
        %s173 = smul.addr %s172, 256
        %s174 = scalar_lea.vmem [#allocation2], %s173
        %s175 = smul.u32 64, %s18
        %p176 = scmp.lt.s32.totalorder %s175, 63
        %s177 = scalar_select %p176, %s175, 63
        %s178 = smul.addr %s177, 4
        %s179 = scalar_lea.vmem %s0, %s178
        %s180 = smul.u32 64, %s18
        %s181 = smul.u32 32, %s18
        %v183 = vld [vmem:[%s179] sm:$0xf]
        %v184 = vld [vmem:[%s179 + $0x4] sm:$0xf]
        %v185 = vld [vmem:[%s179 + $0x8] sm:$0xf]
        %v186 = vld [vmem:[%s179 + $0xc] sm:$0xf]
        %v187 = vld [vmem:[%s179 + $0x10] sm:$0xf]
        %v188 = vld [vmem:[%s179 + $0x14] sm:$0xf]
        %v189 = vld [vmem:[%s179 + $0x18] sm:$0xf]
        %v190 = vld [vmem:[%s179 + $0x1c] sm:$0xf]
        %v191 = vld [vmem:[%s179 + $0x20] sm:$0xf]
        %v192 = vld [vmem:[%s179 + $0x24] sm:$0xf]
        %v193 = vld [vmem:[%s179 + $0x28] sm:$0xf]
        %v194 = vld [vmem:[%s179 + $0x2c] sm:$0xf]
        %v195 = vld [vmem:[%s179 + $0x30] sm:$0xf]
        %v196 = vld [vmem:[%s179 + $0x34] sm:$0xf]
        %v197 = vld [vmem:[%s179 + $0x38] sm:$0xf]
        %v198 = vld [vmem:[%s179 + $0x3c] sm:$0xf]
        %v199 = vld [vmem:[%s179 + $0x40] sm:$0xf]
        %v200 = vld [vmem:[%s179 + $0x44] sm:$0xf]
        %v201 = vld [vmem:[%s179 + $0x48] sm:$0xf]
        %v202 = vld [vmem:[%s179 + $0x4c] sm:$0xf]
        %v203 = vld [vmem:[%s179 + $0x50] sm:$0xf]
        %v204 = vld [vmem:[%s179 + $0x54] sm:$0xf]
        %v205 = vld [vmem:[%s179 + $0x58] sm:$0xf]
        %v206 = vld [vmem:[%s179 + $0x5c] sm:$0xf]
        %v207 = vld [vmem:[%s179 + $0x60] sm:$0xf]
        %v208 = vld [vmem:[%s179 + $0x64] sm:$0xf]
        %v209 = vld [vmem:[%s179 + $0x68] sm:$0xf]
        %v210 = vld [vmem:[%s179 + $0x6c] sm:$0xf]
        %v211 = vld [vmem:[%s179 + $0x70] sm:$0xf]
        %v212 = vld [vmem:[%s179 + $0x74] sm:$0xf]
        %v213 = vld [vmem:[%s179 + $0x78] sm:$0xf]
        %v214 = vld [vmem:[%s179 + $0x7c] sm:$0xf]
        %v215 = vld [vmem:[%s179 + $0x80] sm:$0xf]
        %v216 = vld [vmem:[%s179 + $0x84] sm:$0xf]
        %v217 = vld [vmem:[%s179 + $0x88] sm:$0xf]
        %v218 = vld [vmem:[%s179 + $0x8c] sm:$0xf]
        %v219 = vld [vmem:[%s179 + $0x90] sm:$0xf]
        %v220 = vld [vmem:[%s179 + $0x94] sm:$0xf]
        %v221 = vld [vmem:[%s179 + $0x98] sm:$0xf]
        %v222 = vld [vmem:[%s179 + $0x9c] sm:$0xf]
        %v223 = vld [vmem:[%s179 + $0xa0] sm:$0xf]
        %v224 = vld [vmem:[%s179 + $0xa4] sm:$0xf]
        %v225 = vld [vmem:[%s179 + $0xa8] sm:$0xf]
        %v226 = vld [vmem:[%s179 + $0xac] sm:$0xf]
        %v227 = vld [vmem:[%s179 + $0xb0] sm:$0xf]
        %v228 = vld [vmem:[%s179 + $0xb4] sm:$0xf]
        %v229 = vld [vmem:[%s179 + $0xb8] sm:$0xf]
        %v230 = vld [vmem:[%s179 + $0xbc] sm:$0xf]
        %v231 = vld [vmem:[%s179 + $0xc0] sm:$0xf]
        %v232 = vld [vmem:[%s179 + $0xc4] sm:$0xf]
        %v233 = vld [vmem:[%s179 + $0xc8] sm:$0xf]
        %v234 = vld [vmem:[%s179 + $0xcc] sm:$0xf]
        %v235 = vld [vmem:[%s179 + $0xd0] sm:$0xf]
        %v236 = vld [vmem:[%s179 + $0xd4] sm:$0xf]
        %v237 = vld [vmem:[%s179 + $0xd8] sm:$0xf]
        %v238 = vld [vmem:[%s179 + $0xdc] sm:$0xf]
        %v239 = vld [vmem:[%s179 + $0xe0] sm:$0xf]
        %v240 = vld [vmem:[%s179 + $0xe4] sm:$0xf]
        %v241 = vld [vmem:[%s179 + $0xe8] sm:$0xf]
        %v242 = vld [vmem:[%s179 + $0xec] sm:$0xf]
        %v243 = vld [vmem:[%s179 + $0xf0] sm:$0xf]
        %v244 = vld [vmem:[%s179 + $0xf4] sm:$0xf]
        %v245 = vld [vmem:[%s179 + $0xf8] sm:$0xf]
        %v246 = vld [vmem:[%s179 + $0xfc] sm:$0xf]
        %s247 = smul.u32 %s19, 4
        %s248 = smul.addr %s247, 4
        %s249 = scalar_lea.vmem %s1, %s248
        %v250 = vld [vmem:[%s249] sm:$0xf]
        %v251 = vld [vmem:[%s249 + $0x4] sm:$0xf]
        %v252 = vld [vmem:[%s249 + $0x8] sm:$0xf]
        %v253 = vld [vmem:[%s249 + $0xc] sm:$0xf]
        %v254 = vld [vmem:[%s2] sm:$0x1]
        %v256 = vlaneseq
        %v257 = vshrl.u32 %v256, 7
        %v258 = vsub.s32 0, %v257
        %v259 = vrot.slane %v254, %v258
        %v325 = vunpack.c.l.b16 %v183
        %v326 = vunpack.c.l.b16 %v184
        %v327 = vunpack.c.l.b16 %v185
        %v328 = vunpack.c.l.b16 %v186
        %v329 = vunpack.c.l.b16 %v187
        %v330 = vunpack.c.l.b16 %v188
        %v331 = vunpack.c.l.b16 %v189
        %v332 = vunpack.c.l.b16 %v190
        %v333 = vunpack.c.l.b16 %v191
        %v334 = vunpack.c.l.b16 %v192
        %v335 = vunpack.c.l.b16 %v193
        %v336 = vunpack.c.l.b16 %v194
        %v337 = vunpack.c.l.b16 %v195
        %v338 = vunpack.c.l.b16 %v196
        %v339 = vunpack.c.l.b16 %v197
        %v340 = vunpack.c.l.b16 %v198
        %v341 = vunpack.c.l.b16 %v199
        %v342 = vunpack.c.l.b16 %v200
        %v343 = vunpack.c.l.b16 %v201
        %v344 = vunpack.c.l.b16 %v202
        %v345 = vunpack.c.l.b16 %v203
        %v346 = vunpack.c.l.b16 %v204
        %v347 = vunpack.c.l.b16 %v205
        %v348 = vunpack.c.l.b16 %v206
        %v349 = vunpack.c.l.b16 %v207
        %v350 = vunpack.c.l.b16 %v208
        %v351 = vunpack.c.l.b16 %v209
        %v352 = vunpack.c.l.b16 %v210
        %v353 = vunpack.c.l.b16 %v211
        %v354 = vunpack.c.l.b16 %v212
        %v355 = vunpack.c.l.b16 %v213
        %v356 = vunpack.c.l.b16 %v214
        %v357 = vunpack.c.l.b16 %v215
        %v358 = vunpack.c.l.b16 %v216
        %v359 = vunpack.c.l.b16 %v217
        %v360 = vunpack.c.l.b16 %v218
        %v361 = vunpack.c.l.b16 %v219
        %v362 = vunpack.c.l.b16 %v220
        %v363 = vunpack.c.l.b16 %v221
        %v364 = vunpack.c.l.b16 %v222
        %v365 = vunpack.c.l.b16 %v223
        %v366 = vunpack.c.l.b16 %v224
        %v367 = vunpack.c.l.b16 %v225
        %v368 = vunpack.c.l.b16 %v226
        %v369 = vunpack.c.l.b16 %v227
        %v370 = vunpack.c.l.b16 %v228
        %v371 = vunpack.c.l.b16 %v229
        %v372 = vunpack.c.l.b16 %v230
        %v373 = vunpack.c.l.b16 %v231
        %v374 = vunpack.c.l.b16 %v232
        %v375 = vunpack.c.l.b16 %v233
        %v376 = vunpack.c.l.b16 %v234
        %v377 = vunpack.c.l.b16 %v235
        %v378 = vunpack.c.l.b16 %v236
        %v379 = vunpack.c.l.b16 %v237
        %v380 = vunpack.c.l.b16 %v238
        %v381 = vunpack.c.l.b16 %v239
        %v382 = vunpack.c.l.b16 %v240
        %v383 = vunpack.c.l.b16 %v241
        %v384 = vunpack.c.l.b16 %v242
        %v385 = vunpack.c.l.b16 %v243
        %v386 = vunpack.c.l.b16 %v244
        %v387 = vunpack.c.l.b16 %v245
        %v388 = vunpack.c.l.b16 %v246
        %v389 = vpack.c.b16 %v326, %v325
        %v390 = vpack.c.b16 %v328, %v327
        %v391 = vpack.c.b16 %v330, %v329
        %v392 = vpack.c.b16 %v332, %v331
        %v393 = vpack.c.b16 %v334, %v333
        %v394 = vpack.c.b16 %v336, %v335
        %v395 = vpack.c.b16 %v338, %v337
        %v396 = vpack.c.b16 %v340, %v339
        %v397 = vpack.c.b16 %v342, %v341
        %v398 = vpack.c.b16 %v344, %v343
        %v399 = vpack.c.b16 %v346, %v345
        %v400 = vpack.c.b16 %v348, %v347
        %v401 = vpack.c.b16 %v350, %v349
        %v402 = vpack.c.b16 %v352, %v351
        %v403 = vpack.c.b16 %v354, %v353
        %v404 = vpack.c.b16 %v356, %v355
        %v405 = vpack.c.b16 %v358, %v357
        %v406 = vpack.c.b16 %v360, %v359
        %v407 = vpack.c.b16 %v362, %v361
        %v408 = vpack.c.b16 %v364, %v363
        %v409 = vpack.c.b16 %v366, %v365
        %v410 = vpack.c.b16 %v368, %v367
        %v411 = vpack.c.b16 %v370, %v369
        %v412 = vpack.c.b16 %v372, %v371
        %v413 = vpack.c.b16 %v374, %v373
        %v414 = vpack.c.b16 %v376, %v375
        %v415 = vpack.c.b16 %v378, %v377
        %v416 = vpack.c.b16 %v380, %v379
        %v417 = vpack.c.b16 %v382, %v381
        %v418 = vpack.c.b16 %v384, %v383
        %v419 = vpack.c.b16 %v386, %v385
        %v420 = vpack.c.b16 %v388, %v387
        %v425 = vunpack.c.l.b16 %v250
        %v426 = vunpack.c.l.b16 %v251
        %v427 = vunpack.c.l.b16 %v252
        %v428 = vunpack.c.l.b16 %v253
        %v429 = vpack.c.b16 %v426, %v425
        %v430 = vpack.c.b16 %v428, %v427
        %vm433 = vcmask 261120
        %v435 = vsel %vm433, %v389, 0
        %v438 = vsel %vm433, %v390, 0
        %v441 = vsel %vm433, %v391, 0
        %v444 = vsel %vm433, %v392, 0
        %v447 = vsel %vm433, %v393, 0
        %v450 = vsel %vm433, %v394, 0
        %v453 = vsel %vm433, %v395, 0
        %v456 = vsel %vm433, %v396, 0
        %v459 = vsel %vm433, %v397, 0
        %v462 = vsel %vm433, %v398, 0
        %v465 = vsel %vm433, %v399, 0
        %v468 = vsel %vm433, %v400, 0
        %v471 = vsel %vm433, %v401, 0
        %v474 = vsel %vm433, %v402, 0
        %v477 = vsel %vm433, %v403, 0
        %v480 = vsel %vm433, %v404, 0
        %v483 = vsel %vm433, %v405, 0
        %v486 = vsel %vm433, %v406, 0
        %v489 = vsel %vm433, %v407, 0
        %v492 = vsel %vm433, %v408, 0
        %v495 = vsel %vm433, %v409, 0
        %v498 = vsel %vm433, %v410, 0
        %v501 = vsel %vm433, %v411, 0
        %v504 = vsel %vm433, %v412, 0
        %v507 = vsel %vm433, %v413, 0
        %v510 = vsel %vm433, %v414, 0
        %v513 = vsel %vm433, %v415, 0
        %v516 = vsel %vm433, %v416, 0
        %v519 = vsel %vm433, %v417, 0
        %v522 = vsel %vm433, %v418, 0
        %v525 = vsel %vm433, %v419, 0
        %v528 = vsel %vm433, %v420, 0
        %530 = vmatprep.subr.bf16.mxu0 0
        %531 = vmatpush1.bf16.msra.mxu0 %v429
        %532 = vmatprep.subr.bf16.mxu0 0
        %533 = vmatpush1.bf16.msra.mxu0 %v430
        %534 = vmatprep.subr.bf16.mxu0 0
        %535 = vmatpush1.bf16.msra.mxu0 0
        %536 = vmatprep.subr.bf16.mxu0 0
        %537 = vmatpush1.bf16.msra.mxu0 0
        %538 = vmatprep.subr.bf16.mxu0 0
        %539 = vmatpush1.bf16.msra.mxu0 0
        %540 = vmatprep.subr.bf16.mxu0 0
        %541 = vmatpush1.bf16.msra.mxu0 0
        %542 = vmatprep.subr.bf16.mxu0 0
        %543 = vmatpush1.bf16.msra.mxu0 0
        %544 = vmatprep.subr.bf16.mxu0 0
        %545 = vmatpush1.bf16.msra.mxu0 0
        %546 = vmatprep.subr.bf16.mxu0 0
        %547 = vmatpush1.bf16.msra.mxu0 0
        %548 = vmatprep.subr.bf16.mxu0 0
        %549 = vmatpush1.bf16.msra.mxu0 0
        %550 = vmatprep.subr.bf16.mxu0 0
        %551 = vmatpush1.bf16.msra.mxu0 0
        %552 = vmatprep.subr.bf16.mxu0 0
        %553 = vmatpush1.bf16.msra.mxu0 0
        %554 = vmatprep.subr.bf16.mxu0 0
        %555 = vmatpush1.bf16.msra.mxu0 0
        %556 = vmatprep.subr.bf16.mxu0 0
        %557 = vmatpush1.bf16.msra.mxu0 0
        %558 = vmatprep.subr.bf16.mxu0 0
        %559 = vmatpush1.bf16.msra.mxu0 0
        %560 = vmatprep.subr.bf16.mxu0 0
        %561 = vmatpush1.bf16.msra.mxu0 0
        %562 = vmatprep.mubr.bf16.mxu0 0
        %563 = vmatmul.mubr.bf16.gmra.mrb[0].mxu0 %v435
        %v564 = vpop.f32.mrb[0].mxu0
        %v565 = vadd.f32 %v259, %v564
        %v566 = vpop.f32.mrb[0].mxu0
        %v567 = vpop.f32.mrb[0].mxu0
        %v568 = vadd.f32 %v259, %v567
        %v569 = vpop.f32.mrb[0].mxu0
        %570 = vmatprep.mubr.bf16.mxu0 0
        %571 = vmatmul.mubr.bf16.gmra.mrb[0].mxu0 %v438
        %v572 = vpop.f32.mrb[0].mxu0
        %v573 = vadd.f32 %v259, %v572
        %v574 = vpop.f32.mrb[0].mxu0
        %v575 = vpop.f32.mrb[0].mxu0
        %v576 = vadd.f32 %v259, %v575
        %v577 = vpop.f32.mrb[0].mxu0
        %578 = vmatprep.mubr.bf16.mxu0 0
        %579 = vmatmul.mubr.bf16.gmra.mrb[0].mxu0 %v441
        %v580 = vpop.f32.mrb[0].mxu0
        %v581 = vadd.f32 %v259, %v580
        %v582 = vpop.f32.mrb[0].mxu0
        %v583 = vpop.f32.mrb[0].mxu0
        %v584 = vadd.f32 %v259, %v583
        %v585 = vpop.f32.mrb[0].mxu0
        %586 = vmatprep.mubr.bf16.mxu0 0
        %587 = vmatmul.mubr.bf16.gmra.mrb[0].mxu0 %v444
        %v588 = vpop.f32.mrb[0].mxu0
        %v589 = vadd.f32 %v259, %v588
        %v590 = vpop.f32.mrb[0].mxu0
        %v591 = vpop.f32.mrb[0].mxu0
        %v592 = vadd.f32 %v259, %v591
        %v593 = vpop.f32.mrb[0].mxu0
        %594 = vmatprep.mubr.bf16.mxu0 0
        %595 = vmatmul.mubr.bf16.gmra.mrb[0].mxu0 %v447
        %v596 = vpop.f32.mrb[0].mxu0
        %v597 = vadd.f32 %v259, %v596
        %v598 = vpop.f32.mrb[0].mxu0
        %v599 = vpop.f32.mrb[0].mxu0
        %v600 = vadd.f32 %v259, %v599
        %v601 = vpop.f32.mrb[0].mxu0
        %602 = vmatprep.mubr.bf16.mxu0 0
        %603 = vmatmul.mubr.bf16.gmra.mrb[0].mxu0 %v450
        %v604 = vpop.f32.mrb[0].mxu0
        %v605 = vadd.f32 %v259, %v604
        %v606 = vpop.f32.mrb[0].mxu0
        %v607 = vpop.f32.mrb[0].mxu0
        %v608 = vadd.f32 %v259, %v607
        %v609 = vpop.f32.mrb[0].mxu0
        %610 = vmatprep.mubr.bf16.mxu0 0
        %611 = vmatmul.mubr.bf16.gmra.mrb[0].mxu0 %v453
        %v612 = vpop.f32.mrb[0].mxu0
        %v613 = vadd.f32 %v259, %v612
        %v614 = vpop.f32.mrb[0].mxu0
        %v615 = vpop.f32.mrb[0].mxu0
        %v616 = vadd.f32 %v259, %v615
        %v617 = vpop.f32.mrb[0].mxu0
        %618 = vmatprep.mubr.bf16.mxu0 0
        %619 = vmatmul.mubr.bf16.gmra.mrb[0].mxu0 %v456
        %v620 = vpop.f32.mrb[0].mxu0
        %v621 = vadd.f32 %v259, %v620
        %v622 = vpop.f32.mrb[0].mxu0
        %v623 = vpop.f32.mrb[0].mxu0
        %v624 = vadd.f32 %v259, %v623
        %v625 = vpop.f32.mrb[0].mxu0
        %626 = vmatprep.mubr.bf16.mxu0 0
        %627 = vmatmul.mubr.bf16.gmra.mrb[0].mxu0 %v459
        %v628 = vpop.f32.mrb[0].mxu0
        %v629 = vadd.f32 %v259, %v628
        %v630 = vpop.f32.mrb[0].mxu0
        %v631 = vpop.f32.mrb[0].mxu0
        %v632 = vadd.f32 %v259, %v631
        %v633 = vpop.f32.mrb[0].mxu0
        %634 = vmatprep.mubr.bf16.mxu0 0
        %635 = vmatmul.mubr.bf16.gmra.mrb[0].mxu0 %v462
        %v636 = vpop.f32.mrb[0].mxu0
        %v637 = vadd.f32 %v259, %v636
        %v638 = vpop.f32.mrb[0].mxu0
        %v639 = vpop.f32.mrb[0].mxu0
        %v640 = vadd.f32 %v259, %v639
        %v641 = vpop.f32.mrb[0].mxu0
        %642 = vmatprep.mubr.bf16.mxu0 0
        %643 = vmatmul.mubr.bf16.gmra.mrb[0].mxu0 %v465
        %v644 = vpop.f32.mrb[0].mxu0
        %v645 = vadd.f32 %v259, %v644
        %v646 = vpop.f32.mrb[0].mxu0
        %v647 = vpop.f32.mrb[0].mxu0
        %v648 = vadd.f32 %v259, %v647
        %v649 = vpop.f32.mrb[0].mxu0
        %650 = vmatprep.mubr.bf16.mxu0 0
        %651 = vmatmul.mubr.bf16.gmra.mrb[0].mxu0 %v468
        %v652 = vpop.f32.mrb[0].mxu0
        %v653 = vadd.f32 %v259, %v652
        %v654 = vpop.f32.mrb[0].mxu0
        %v655 = vpop.f32.mrb[0].mxu0
        %v656 = vadd.f32 %v259, %v655
        %v657 = vpop.f32.mrb[0].mxu0
        %658 = vmatprep.mubr.bf16.mxu0 0
        %659 = vmatmul.mubr.bf16.gmra.mrb[0].mxu0 %v471
        %v660 = vpop.f32.mrb[0].mxu0
        %v661 = vadd.f32 %v259, %v660
        %v662 = vpop.f32.mrb[0].mxu0
        %v663 = vpop.f32.mrb[0].mxu0
        %v664 = vadd.f32 %v259, %v663
        %v665 = vpop.f32.mrb[0].mxu0
        %666 = vmatprep.mubr.bf16.mxu0 0
        %667 = vmatmul.mubr.bf16.gmra.mrb[0].mxu0 %v474
        %v668 = vpop.f32.mrb[0].mxu0
        %v669 = vadd.f32 %v259, %v668
        %v670 = vpop.f32.mrb[0].mxu0
        %v671 = vpop.f32.mrb[0].mxu0
        %v672 = vadd.f32 %v259, %v671
        %v673 = vpop.f32.mrb[0].mxu0
        %674 = vmatprep.mubr.bf16.mxu0 0
        %675 = vmatmul.mubr.bf16.gmra.mrb[0].mxu0 %v477
        %v676 = vpop.f32.mrb[0].mxu0
        %v677 = vadd.f32 %v259, %v676
        %v678 = vpop.f32.mrb[0].mxu0
        %v679 = vpop.f32.mrb[0].mxu0
        %v680 = vadd.f32 %v259, %v679
        %v681 = vpop.f32.mrb[0].mxu0
        %682 = vmatprep.mubr.bf16.mxu0 0
        %683 = vmatmul.mubr.bf16.gmra.mrb[0].mxu0 %v480
        %v684 = vpop.f32.mrb[0].mxu0
        %v685 = vadd.f32 %v259, %v684
        %v686 = vpop.f32.mrb[0].mxu0
        %v687 = vpop.f32.mrb[0].mxu0
        %v688 = vadd.f32 %v259, %v687
        %v689 = vpop.f32.mrb[0].mxu0
        %690 = vmatprep.mubr.bf16.mxu0 0
        %691 = vmatmul.mubr.bf16.gmra.mrb[0].mxu0 %v483
        %v692 = vpop.f32.mrb[0].mxu0
        %v693 = vadd.f32 %v259, %v692
        %v694 = vpop.f32.mrb[0].mxu0
        %v695 = vpop.f32.mrb[0].mxu0
        %v696 = vadd.f32 %v259, %v695
        %v697 = vpop.f32.mrb[0].mxu0
        %698 = vmatprep.mubr.bf16.mxu0 0
        %699 = vmatmul.mubr.bf16.gmra.mrb[0].mxu0 %v486
        %v700 = vpop.f32.mrb[0].mxu0
        %v701 = vadd.f32 %v259, %v700
        %v702 = vpop.f32.mrb[0].mxu0
        %v703 = vpop.f32.mrb[0].mxu0
        %v704 = vadd.f32 %v259, %v703
        %v705 = vpop.f32.mrb[0].mxu0
        %706 = vmatprep.mubr.bf16.mxu0 0
        %707 = vmatmul.mubr.bf16.gmra.mrb[0].mxu0 %v489
        %v708 = vpop.f32.mrb[0].mxu0
        %v709 = vadd.f32 %v259, %v708
        %v710 = vpop.f32.mrb[0].mxu0
        %v711 = vpop.f32.mrb[0].mxu0
        %v712 = vadd.f32 %v259, %v711
        %v713 = vpop.f32.mrb[0].mxu0
        %714 = vmatprep.mubr.bf16.mxu0 0
        %715 = vmatmul.mubr.bf16.gmra.mrb[0].mxu0 %v492
        %v716 = vpop.f32.mrb[0].mxu0
        %v717 = vadd.f32 %v259, %v716
        %v718 = vpop.f32.mrb[0].mxu0
        %v719 = vpop.f32.mrb[0].mxu0
        %v720 = vadd.f32 %v259, %v719
        %v721 = vpop.f32.mrb[0].mxu0
        %722 = vmatprep.mubr.bf16.mxu0 0
        %723 = vmatmul.mubr.bf16.gmra.mrb[0].mxu0 %v495
        %v724 = vpop.f32.mrb[0].mxu0
        %v725 = vadd.f32 %v259, %v724
        %v726 = vpop.f32.mrb[0].mxu0
        %v727 = vpop.f32.mrb[0].mxu0
        %v728 = vadd.f32 %v259, %v727
        %v729 = vpop.f32.mrb[0].mxu0
        %730 = vmatprep.mubr.bf16.mxu0 0
        %731 = vmatmul.mubr.bf16.gmra.mrb[0].mxu0 %v498
        %v732 = vpop.f32.mrb[0].mxu0
        %v733 = vadd.f32 %v259, %v732
        %v734 = vpop.f32.mrb[0].mxu0
        %v735 = vpop.f32.mrb[0].mxu0
        %v736 = vadd.f32 %v259, %v735
        %v737 = vpop.f32.mrb[0].mxu0
        %738 = vmatprep.mubr.bf16.mxu0 0
        %739 = vmatmul.mubr.bf16.gmra.mrb[0].mxu0 %v501
        %v740 = vpop.f32.mrb[0].mxu0
        %v741 = vadd.f32 %v259, %v740
        %v742 = vpop.f32.mrb[0].mxu0
        %v743 = vpop.f32.mrb[0].mxu0
        %v744 = vadd.f32 %v259, %v743
        %v745 = vpop.f32.mrb[0].mxu0
        %746 = vmatprep.mubr.bf16.mxu0 0
        %747 = vmatmul.mubr.bf16.gmra.mrb[0].mxu0 %v504
        %v748 = vpop.f32.mrb[0].mxu0
        %v749 = vadd.f32 %v259, %v748
        %v750 = vpop.f32.mrb[0].mxu0
        %v751 = vpop.f32.mrb[0].mxu0
        %v752 = vadd.f32 %v259, %v751
        %v753 = vpop.f32.mrb[0].mxu0
        %754 = vmatprep.mubr.bf16.mxu0 0
        %755 = vmatmul.mubr.bf16.gmra.mrb[0].mxu0 %v507
        %v756 = vpop.f32.mrb[0].mxu0
        %v757 = vadd.f32 %v259, %v756
        %v758 = vpop.f32.mrb[0].mxu0
        %v759 = vpop.f32.mrb[0].mxu0
        %v760 = vadd.f32 %v259, %v759
        %v761 = vpop.f32.mrb[0].mxu0
        %762 = vmatprep.mubr.bf16.mxu0 0
        %763 = vmatmul.mubr.bf16.gmra.mrb[0].mxu0 %v510
        %v764 = vpop.f32.mrb[0].mxu0
        %v765 = vadd.f32 %v259, %v764
        %v766 = vpop.f32.mrb[0].mxu0
        %v767 = vpop.f32.mrb[0].mxu0
        %v768 = vadd.f32 %v259, %v767
        %v769 = vpop.f32.mrb[0].mxu0
        %770 = vmatprep.mubr.bf16.mxu0 0
        %771 = vmatmul.mubr.bf16.gmra.mrb[0].mxu0 %v513
        %v772 = vpop.f32.mrb[0].mxu0
        %v773 = vadd.f32 %v259, %v772
        %v774 = vpop.f32.mrb[0].mxu0
        %v775 = vpop.f32.mrb[0].mxu0
        %v776 = vadd.f32 %v259, %v775
        %v777 = vpop.f32.mrb[0].mxu0
        %778 = vmatprep.mubr.bf16.mxu0 0
        %779 = vmatmul.mubr.bf16.gmra.mrb[0].mxu0 %v516
        %v780 = vpop.f32.mrb[0].mxu0
        %v781 = vadd.f32 %v259, %v780
        %v782 = vpop.f32.mrb[0].mxu0
        %v783 = vpop.f32.mrb[0].mxu0
        %v784 = vadd.f32 %v259, %v783
        %v785 = vpop.f32.mrb[0].mxu0
        %786 = vmatprep.mubr.bf16.mxu0 0
        %787 = vmatmul.mubr.bf16.gmra.mrb[0].mxu0 %v519
        %v788 = vpop.f32.mrb[0].mxu0
        %v789 = vadd.f32 %v259, %v788
        %v790 = vpop.f32.mrb[0].mxu0
        %v791 = vpop.f32.mrb[0].mxu0
        %v792 = vadd.f32 %v259, %v791
        %v793 = vpop.f32.mrb[0].mxu0
        %794 = vmatprep.mubr.bf16.mxu0 0
        %795 = vmatmul.mubr.bf16.gmra.mrb[0].mxu0 %v522
        %v796 = vpop.f32.mrb[0].mxu0
        %v797 = vadd.f32 %v259, %v796
        %v798 = vpop.f32.mrb[0].mxu0
        %v799 = vpop.f32.mrb[0].mxu0
        %v800 = vadd.f32 %v259, %v799
        %v801 = vpop.f32.mrb[0].mxu0
        %802 = vmatprep.mubr.bf16.mxu0 0
        %803 = vmatmul.mubr.bf16.gmra.mrb[0].mxu0 %v525
        %v804 = vpop.f32.mrb[0].mxu0
        %v805 = vadd.f32 %v259, %v804
        %v806 = vpop.f32.mrb[0].mxu0
        %v807 = vpop.f32.mrb[0].mxu0
        %v808 = vadd.f32 %v259, %v807
        %v809 = vpop.f32.mrb[0].mxu0
        %810 = vmatprep.mubr.bf16.mxu0 0
        %811 = vmatmul.mubr.bf16.gmra.mrb[0].mxu0 %v528
        %v812 = vpop.f32.mrb[0].mxu0
        %v813 = vadd.f32 %v259, %v812
        %v814 = vpop.f32.mrb[0].mxu0
        %v815 = vpop.f32.mrb[0].mxu0
        %v816 = vadd.f32 %v259, %v815
        %v817 = vpop.f32.mrb[0].mxu0
        %818 = vdwg.mxu0
        %v819 = vmax.f32 %v565, 0.0
        %v820 = vmax.f32 %v568, 0.0
        %v821 = vmax.f32 %v573, 0.0
        %v822 = vmax.f32 %v576, 0.0
        %v823 = vmax.f32 %v581, 0.0
        %v824 = vmax.f32 %v584, 0.0
        %v825 = vmax.f32 %v589, 0.0
        %v826 = vmax.f32 %v592, 0.0
        %v827 = vmax.f32 %v597, 0.0
        %v828 = vmax.f32 %v600, 0.0
        %v829 = vmax.f32 %v605, 0.0
        %v830 = vmax.f32 %v608, 0.0
        %v831 = vmax.f32 %v613, 0.0
        %v832 = vmax.f32 %v616, 0.0
        %v833 = vmax.f32 %v621, 0.0
        %v834 = vmax.f32 %v624, 0.0
        %v835 = vmax.f32 %v629, 0.0
        %v836 = vmax.f32 %v632, 0.0
        %v837 = vmax.f32 %v637, 0.0
        %v838 = vmax.f32 %v640, 0.0
        %v839 = vmax.f32 %v645, 0.0
        %v840 = vmax.f32 %v648, 0.0
        %v841 = vmax.f32 %v653, 0.0
        %v842 = vmax.f32 %v656, 0.0
        %v843 = vmax.f32 %v661, 0.0
        %v844 = vmax.f32 %v664, 0.0
        %v845 = vmax.f32 %v669, 0.0
        %v846 = vmax.f32 %v672, 0.0
        %v847 = vmax.f32 %v677, 0.0
        %v848 = vmax.f32 %v680, 0.0
        %v849 = vmax.f32 %v685, 0.0
        %v850 = vmax.f32 %v688, 0.0
        %v851 = vmax.f32 %v693, 0.0
        %v852 = vmax.f32 %v696, 0.0
        %v853 = vmax.f32 %v701, 0.0
        %v854 = vmax.f32 %v704, 0.0
        %v855 = vmax.f32 %v709, 0.0
        %v856 = vmax.f32 %v712, 0.0
        %v857 = vmax.f32 %v717, 0.0
        %v858 = vmax.f32 %v720, 0.0
        %v859 = vmax.f32 %v725, 0.0
        %v860 = vmax.f32 %v728, 0.0
        %v861 = vmax.f32 %v733, 0.0
        %v862 = vmax.f32 %v736, 0.0
        %v863 = vmax.f32 %v741, 0.0
        %v864 = vmax.f32 %v744, 0.0
        %v865 = vmax.f32 %v749, 0.0
        %v866 = vmax.f32 %v752, 0.0
        %v867 = vmax.f32 %v757, 0.0
        %v868 = vmax.f32 %v760, 0.0
        %v869 = vmax.f32 %v765, 0.0
        %v870 = vmax.f32 %v768, 0.0
        %v871 = vmax.f32 %v773, 0.0
        %v872 = vmax.f32 %v776, 0.0
        %v873 = vmax.f32 %v781, 0.0
        %v874 = vmax.f32 %v784, 0.0
        %v875 = vmax.f32 %v789, 0.0
        %v876 = vmax.f32 %v792, 0.0
        %v877 = vmax.f32 %v797, 0.0
        %v878 = vmax.f32 %v800, 0.0
        %v879 = vmax.f32 %v805, 0.0
        %v880 = vmax.f32 %v808, 0.0
        %v881 = vmax.f32 %v813, 0.0
        %v882 = vmax.f32 %v816, 0.0
        %v883 = vpack.c.bf16 %v820, %v819
        %v884 = vpack.c.bf16 %v822, %v821
        %v885 = vpack.c.bf16 %v824, %v823
        %v886 = vpack.c.bf16 %v826, %v825
        %v887 = vpack.c.bf16 %v828, %v827
        %v888 = vpack.c.bf16 %v830, %v829
        %v889 = vpack.c.bf16 %v832, %v831
        %v890 = vpack.c.bf16 %v834, %v833
        %v891 = vpack.c.bf16 %v836, %v835
        %v892 = vpack.c.bf16 %v838, %v837
        %v893 = vpack.c.bf16 %v840, %v839
        %v894 = vpack.c.bf16 %v842, %v841
        %v895 = vpack.c.bf16 %v844, %v843
        %v896 = vpack.c.bf16 %v846, %v845
        %v897 = vpack.c.bf16 %v848, %v847
        %v898 = vpack.c.bf16 %v850, %v849
        %v899 = vpack.c.bf16 %v852, %v851
        %v900 = vpack.c.bf16 %v854, %v853
        %v901 = vpack.c.bf16 %v856, %v855
        %v902 = vpack.c.bf16 %v858, %v857
        %v903 = vpack.c.bf16 %v860, %v859
        %v904 = vpack.c.bf16 %v862, %v861
        %v905 = vpack.c.bf16 %v864, %v863
        %v906 = vpack.c.bf16 %v866, %v865
        %v907 = vpack.c.bf16 %v868, %v867
        %v908 = vpack.c.bf16 %v870, %v869
        %v909 = vpack.c.bf16 %v872, %v871
        %v910 = vpack.c.bf16 %v874, %v873
        %v911 = vpack.c.bf16 %v876, %v875
        %v912 = vpack.c.bf16 %v878, %v877
        %v913 = vpack.c.bf16 %v880, %v879
        %v914 = vpack.c.bf16 %v882, %v881
        %v947 = vunpack.c.l.b16 %v883
        %v948 = vunpack.c.h.b16 %v883
        %v949 = vunpack.c.l.b16 %v884
        %v950 = vunpack.c.h.b16 %v884
        %v951 = vunpack.c.l.b16 %v885
        %v952 = vunpack.c.h.b16 %v885
        %v953 = vunpack.c.l.b16 %v886
        %v954 = vunpack.c.h.b16 %v886
        %v955 = vunpack.c.l.b16 %v887
        %v956 = vunpack.c.h.b16 %v887
        %v957 = vunpack.c.l.b16 %v888
        %v958 = vunpack.c.h.b16 %v888
        %v959 = vunpack.c.l.b16 %v889
        %v960 = vunpack.c.h.b16 %v889
        %v961 = vunpack.c.l.b16 %v890
        %v962 = vunpack.c.h.b16 %v890
        %v963 = vunpack.c.l.b16 %v891
        %v964 = vunpack.c.h.b16 %v891
        %v965 = vunpack.c.l.b16 %v892
        %v966 = vunpack.c.h.b16 %v892
        %v967 = vunpack.c.l.b16 %v893
        %v968 = vunpack.c.h.b16 %v893
        %v969 = vunpack.c.l.b16 %v894
        %v970 = vunpack.c.h.b16 %v894
        %v971 = vunpack.c.l.b16 %v895
        %v972 = vunpack.c.h.b16 %v895
        %v973 = vunpack.c.l.b16 %v896
        %v974 = vunpack.c.h.b16 %v896
        %v975 = vunpack.c.l.b16 %v897
        %v976 = vunpack.c.h.b16 %v897
        %v977 = vunpack.c.l.b16 %v898
        %v978 = vunpack.c.h.b16 %v898
        %v979 = vunpack.c.l.b16 %v899
        %v980 = vunpack.c.h.b16 %v899
        %v981 = vunpack.c.l.b16 %v900
        %v982 = vunpack.c.h.b16 %v900
        %v983 = vunpack.c.l.b16 %v901
        %v984 = vunpack.c.h.b16 %v901
        %v985 = vunpack.c.l.b16 %v902
        %v986 = vunpack.c.h.b16 %v902
        %v987 = vunpack.c.l.b16 %v903
        %v988 = vunpack.c.h.b16 %v903
        %v989 = vunpack.c.l.b16 %v904
        %v990 = vunpack.c.h.b16 %v904
        %v991 = vunpack.c.l.b16 %v905
        %v992 = vunpack.c.h.b16 %v905
        %v993 = vunpack.c.l.b16 %v906
        %v994 = vunpack.c.h.b16 %v906
        %v995 = vunpack.c.l.b16 %v907
        %v996 = vunpack.c.h.b16 %v907
        %v997 = vunpack.c.l.b16 %v908
        %v998 = vunpack.c.h.b16 %v908
        %v999 = vunpack.c.l.b16 %v909
        %v1000 = vunpack.c.h.b16 %v909
        %v1001 = vunpack.c.l.b16 %v910
        %v1002 = vunpack.c.h.b16 %v910
        %v1003 = vunpack.c.l.b16 %v911
        %v1004 = vunpack.c.h.b16 %v911
        %v1005 = vunpack.c.l.b16 %v912
        %v1006 = vunpack.c.h.b16 %v912
        %v1007 = vunpack.c.l.b16 %v913
        %v1008 = vunpack.c.h.b16 %v913
        %v1009 = vunpack.c.l.b16 %v914
        %v1010 = vunpack.c.h.b16 %v914
        %v1011 = vpack.c.b16 %v947, %v947
        %v1012 = vpack.c.b16 %v948, %v948
        %v1013 = vpack.c.b16 %v949, %v949
        %v1014 = vpack.c.b16 %v950, %v950
        %v1015 = vpack.c.b16 %v951, %v951
        %v1016 = vpack.c.b16 %v952, %v952
        %v1017 = vpack.c.b16 %v953, %v953
        %v1018 = vpack.c.b16 %v954, %v954
        %v1019 = vpack.c.b16 %v955, %v955
        %v1020 = vpack.c.b16 %v956, %v956
        %v1021 = vpack.c.b16 %v957, %v957
        %v1022 = vpack.c.b16 %v958, %v958
        %v1023 = vpack.c.b16 %v959, %v959
        %v1024 = vpack.c.b16 %v960, %v960
        %v1025 = vpack.c.b16 %v961, %v961
        %v1026 = vpack.c.b16 %v962, %v962
        %v1027 = vpack.c.b16 %v963, %v963
        %v1028 = vpack.c.b16 %v964, %v964
        %v1029 = vpack.c.b16 %v965, %v965
        %v1030 = vpack.c.b16 %v966, %v966
        %v1031 = vpack.c.b16 %v967, %v967
        %v1032 = vpack.c.b16 %v968, %v968
        %v1033 = vpack.c.b16 %v969, %v969
        %v1034 = vpack.c.b16 %v970, %v970
        %v1035 = vpack.c.b16 %v971, %v971
        %v1036 = vpack.c.b16 %v972, %v972
        %v1037 = vpack.c.b16 %v973, %v973
        %v1038 = vpack.c.b16 %v974, %v974
        %v1039 = vpack.c.b16 %v975, %v975
        %v1040 = vpack.c.b16 %v976, %v976
        %v1041 = vpack.c.b16 %v977, %v977
        %v1042 = vpack.c.b16 %v978, %v978
        %v1043 = vpack.c.b16 %v979, %v979
        %v1044 = vpack.c.b16 %v980, %v980
        %v1045 = vpack.c.b16 %v981, %v981
        %v1046 = vpack.c.b16 %v982, %v982
        %v1047 = vpack.c.b16 %v983, %v983
        %v1048 = vpack.c.b16 %v984, %v984
        %v1049 = vpack.c.b16 %v985, %v985
        %v1050 = vpack.c.b16 %v986, %v986
        %v1051 = vpack.c.b16 %v987, %v987
        %v1052 = vpack.c.b16 %v988, %v988
        %v1053 = vpack.c.b16 %v989, %v989
        %v1054 = vpack.c.b16 %v990, %v990
        %v1055 = vpack.c.b16 %v991, %v991
        %v1056 = vpack.c.b16 %v992, %v992
        %v1057 = vpack.c.b16 %v993, %v993
        %v1058 = vpack.c.b16 %v994, %v994
        %v1059 = vpack.c.b16 %v995, %v995
        %v1060 = vpack.c.b16 %v996, %v996
        %v1061 = vpack.c.b16 %v997, %v997
        %v1062 = vpack.c.b16 %v998, %v998
        %v1063 = vpack.c.b16 %v999, %v999
        %v1064 = vpack.c.b16 %v1000, %v1000
        %v1065 = vpack.c.b16 %v1001, %v1001
        %v1066 = vpack.c.b16 %v1002, %v1002
        %v1067 = vpack.c.b16 %v1003, %v1003
        %v1068 = vpack.c.b16 %v1004, %v1004
        %v1069 = vpack.c.b16 %v1005, %v1005
        %v1070 = vpack.c.b16 %v1006, %v1006
        %v1071 = vpack.c.b16 %v1007, %v1007
        %v1072 = vpack.c.b16 %v1008, %v1008
        %v1073 = vpack.c.b16 %v1009, %v1009
        %v1074 = vpack.c.b16 %v1010, %v1010
        %1139 = vst [vmem:[%s174] sm:$0xf] %v1011
        %1140 = vst [vmem:[%s174 + $0x4] sm:$0xf] %v1012
        %1141 = vst [vmem:[%s174 + $0x8] sm:$0xf] %v1013
        %1142 = vst [vmem:[%s174 + $0xc] sm:$0xf] %v1014
        %1143 = vst [vmem:[%s174 + $0x10] sm:$0xf] %v1015
        %1144 = vst [vmem:[%s174 + $0x14] sm:$0xf] %v1016
        %1145 = vst [vmem:[%s174 + $0x18] sm:$0xf] %v1017
        %1146 = vst [vmem:[%s174 + $0x1c] sm:$0xf] %v1018
        %1147 = vst [vmem:[%s174 + $0x20] sm:$0xf] %v1019
        %1148 = vst [vmem:[%s174 + $0x24] sm:$0xf] %v1020
        %1149 = vst [vmem:[%s174 + $0x28] sm:$0xf] %v1021
        %1150 = vst [vmem:[%s174 + $0x2c] sm:$0xf] %v1022
        %1151 = vst [vmem:[%s174 + $0x30] sm:$0xf] %v1023
        %1152 = vst [vmem:[%s174 + $0x34] sm:$0xf] %v1024
        %1153 = vst [vmem:[%s174 + $0x38] sm:$0xf] %v1025
        %1154 = vst [vmem:[%s174 + $0x3c] sm:$0xf] %v1026
        %1155 = vst [vmem:[%s174 + $0x40] sm:$0xf] %v1027
        %1156 = vst [vmem:[%s174 + $0x44] sm:$0xf] %v1028
        %1157 = vst [vmem:[%s174 + $0x48] sm:$0xf] %v1029
        %1158 = vst [vmem:[%s174 + $0x4c] sm:$0xf] %v1030
        %1159 = vst [vmem:[%s174 + $0x50] sm:$0xf] %v1031
        %1160 = vst [vmem:[%s174 + $0x54] sm:$0xf] %v1032
        %1161 = vst [vmem:[%s174 + $0x58] sm:$0xf] %v1033
        %1162 = vst [vmem:[%s174 + $0x5c] sm:$0xf] %v1034
        %1163 = vst [vmem:[%s174 + $0x60] sm:$0xf] %v1035
        %1164 = vst [vmem:[%s174 + $0x64] sm:$0xf] %v1036
        %1165 = vst [vmem:[%s174 + $0x68] sm:$0xf] %v1037
        %1166 = vst [vmem:[%s174 + $0x6c] sm:$0xf] %v1038
        %1167 = vst [vmem:[%s174 + $0x70] sm:$0xf] %v1039
        %1168 = vst [vmem:[%s174 + $0x74] sm:$0xf] %v1040
        %1169 = vst [vmem:[%s174 + $0x78] sm:$0xf] %v1041
        %1170 = vst [vmem:[%s174 + $0x7c] sm:$0xf] %v1042
        %1171 = vst [vmem:[%s174 + $0x80] sm:$0xf] %v1043
        %1172 = vst [vmem:[%s174 + $0x84] sm:$0xf] %v1044
        %1173 = vst [vmem:[%s174 + $0x88] sm:$0xf] %v1045
        %1174 = vst [vmem:[%s174 + $0x8c] sm:$0xf] %v1046
        %1175 = vst [vmem:[%s174 + $0x90] sm:$0xf] %v1047
        %1176 = vst [vmem:[%s174 + $0x94] sm:$0xf] %v1048
        %1177 = vst [vmem:[%s174 + $0x98] sm:$0xf] %v1049
        %1178 = vst [vmem:[%s174 + $0x9c] sm:$0xf] %v1050
        %1179 = vst [vmem:[%s174 + $0xa0] sm:$0xf] %v1051
        %1180 = vst [vmem:[%s174 + $0xa4] sm:$0xf] %v1052
        %1181 = vst [vmem:[%s174 + $0xa8] sm:$0xf] %v1053
        %1182 = vst [vmem:[%s174 + $0xac] sm:$0xf] %v1054
        %1183 = vst [vmem:[%s174 + $0xb0] sm:$0xf] %v1055
        %1184 = vst [vmem:[%s174 + $0xb4] sm:$0xf] %v1056
        %1185 = vst [vmem:[%s174 + $0xb8] sm:$0xf] %v1057
        %1186 = vst [vmem:[%s174 + $0xbc] sm:$0xf] %v1058
        %1187 = vst [vmem:[%s174 + $0xc0] sm:$0xf] %v1059
        %1188 = vst [vmem:[%s174 + $0xc4] sm:$0xf] %v1060
        %1189 = vst [vmem:[%s174 + $0xc8] sm:$0xf] %v1061
        %1190 = vst [vmem:[%s174 + $0xcc] sm:$0xf] %v1062
        %1191 = vst [vmem:[%s174 + $0xd0] sm:$0xf] %v1063
        %1192 = vst [vmem:[%s174 + $0xd4] sm:$0xf] %v1064
        %1193 = vst [vmem:[%s174 + $0xd8] sm:$0xf] %v1065
        %1194 = vst [vmem:[%s174 + $0xdc] sm:$0xf] %v1066
        %1195 = vst [vmem:[%s174 + $0xe0] sm:$0xf] %v1067
        %1196 = vst [vmem:[%s174 + $0xe4] sm:$0xf] %v1068
        %1197 = vst [vmem:[%s174 + $0xe8] sm:$0xf] %v1069
        %1198 = vst [vmem:[%s174 + $0xec] sm:$0xf] %v1070
        %1199 = vst [vmem:[%s174 + $0xf0] sm:$0xf] %v1071
        %1200 = vst [vmem:[%s174 + $0xf4] sm:$0xf] %v1072
        %1201 = vst [vmem:[%s174 + $0xf8] sm:$0xf] %v1073
        %1202 = vst [vmem:[%s174 + $0xfc] sm:$0xf] %v1074
        %s1203 = sand.u32 %s104, 1
        %s1204 = sand.u32 %s104, 1
        %s1205 = smul.addr %s1204, 256
        %s1206 = scalar_lea.vmem [#allocation2], %s1205
        // Predicated region
        $region33: #{basic_deconv_forward.1} parent=31 // pred_check
          %p1207 = pneg %p114
        $region34: #{basic_deconv_forward.1} parent=31 // pred_check_branch
          %1209 = sbr.rel (%p1207) target = $region36
        $region35: #{basic_deconv_forward.1} parent=31 // pred_region
          %s1210 = smul.u32 32, %s18
          %s1211 = smul.addr %s19, 2
          %s1212 = smul.addr %s1210, 4
          %s1213 = sadd.s32 %s1211, %s1212
          %s1214 = smul.addr %s1213, 4
          %s1215 = scalar_lea.vmem %s3, %s1214
          // Predicated region
          $region37: #{basic_deconv_forward.1} parent=35 // pred_check
            _
          $region38: #{basic_deconv_forward.1} parent=35 // pred_check_branch
            %1217 = sbr.rel (0) target = $region40
          $region39: #{basic_deconv_forward.1} parent=35 // pred_region
            // Predicated region
            $region41: #{basic_deconv_forward.1} parent=39 // pred_check
              _
            $region42: #{basic_deconv_forward.1} parent=39 // pred_check_branch
              %1219 = sbr.rel target = $region44
            $region43: #{basic_deconv_forward.1} parent=39 // pred_region
              // Predicated region
              $region56: #{basic_deconv_forward.1} parent=43 // pred_check
                _
              $region57: #{basic_deconv_forward.1} parent=43 // pred_check_branch
                %1360 = sbr.rel (0) target = $region59
              $region58: #{basic_deconv_forward.1} parent=43 // pred_region
                loop: start=0, step=1, limit=1
                $region60: #{basic_deconv_forward.1} parent=58 // loop_pre_header
                  _
                $region61: #{basic_deconv_forward.1} parent=58 // loop_header
                  %s1362 = sphi 0, %s1366
                  %p1363 = scmp.ge.s32.totalorder %s1362, 1
                  %s1367 = sphi %s1206, %s1206
                  %s1368 = sphi %s1215, %s1215
                $region62: #{basic_deconv_forward.1} parent=58 // loop_header_branch
                  %1365 = sbr.rel (%p1363) target = $region66
                $region63: #{basic_deconv_forward.1} parent=58 // loop_body
                  _
                $region64: #{basic_deconv_forward.1} parent=58 // loop_footer
                  %s1366 = sadd.s32 1, %s1362
                $region65: #{basic_deconv_forward.1} parent=58 // loop_footer_branch
                  %1361 = sbr.rel target = $region61
                $region66: #{basic_deconv_forward.1} parent=58 // loop_exit
                  _
                loop: start=0, step=1, limit=1
                $region67: #{basic_deconv_forward.1} parent=58 // loop_pre_header
                  _
                $region68: #{basic_deconv_forward.1} parent=58 // loop_header
                  %s1371 = sphi 0, %s1375
                  %p1372 = scmp.ge.s32.totalorder %s1371, 1
                  %s1376 = sphi %s1206, %s1206
                  %s1377 = sphi %s1215, %s1215
                $region69: #{basic_deconv_forward.1} parent=58 // loop_header_branch
                  %1374 = sbr.rel (%p1372) target = $region73
                $region70: #{basic_deconv_forward.1} parent=58 // loop_body
                  %v1378 = vld [vmem:[%s1376] sm:$0xf]
                  %1379 = vst [vmem:[%s1377] sm:$0xf] %v1378
                  %v1380 = vld [vmem:[%s1376 + $0x4] sm:$0xf]
                  %1381 = vst [vmem:[%s1377 + $0x4] sm:$0xf] %v1380
                  %v1382 = vld [vmem:[%s1376 + $0x8] sm:$0xf]
                  %1383 = vst [vmem:[%s1377 + $0x10] sm:$0xf] %v1382
                  %v1384 = vld [vmem:[%s1376 + $0xc] sm:$0xf]
                  %1385 = vst [vmem:[%s1377 + $0x14] sm:$0xf] %v1384
                  %v1386 = vld [vmem:[%s1376 + $0x10] sm:$0xf]
                  %1387 = vst [vmem:[%s1377 + $0x20] sm:$0xf] %v1386
                  %v1388 = vld [vmem:[%s1376 + $0x14] sm:$0xf]
                  %1389 = vst [vmem:[%s1377 + $0x24] sm:$0xf] %v1388
                  %v1390 = vld [vmem:[%s1376 + $0x18] sm:$0xf]
                  %1391 = vst [vmem:[%s1377 + $0x30] sm:$0xf] %v1390
                  %v1392 = vld [vmem:[%s1376 + $0x1c] sm:$0xf]
                  %1393 = vst [vmem:[%s1377 + $0x34] sm:$0xf] %v1392
                  %v1394 = vld [vmem:[%s1376 + $0x20] sm:$0xf]
                  %1395 = vst [vmem:[%s1377 + $0x40] sm:$0xf] %v1394
                  %v1396 = vld [vmem:[%s1376 + $0x24] sm:$0xf]
                  %1397 = vst [vmem:[%s1377 + $0x44] sm:$0xf] %v1396
                  %v1398 = vld [vmem:[%s1376 + $0x28] sm:$0xf]
                  %1399 = vst [vmem:[%s1377 + $0x50] sm:$0xf] %v1398
                  %v1400 = vld [vmem:[%s1376 + $0x2c] sm:$0xf]
                  %1401 = vst [vmem:[%s1377 + $0x54] sm:$0xf] %v1400
                  %v1402 = vld [vmem:[%s1376 + $0x30] sm:$0xf]
                  %1403 = vst [vmem:[%s1377 + $0x60] sm:$0xf] %v1402
                  %v1404 = vld [vmem:[%s1376 + $0x34] sm:$0xf]
                  %1405 = vst [vmem:[%s1377 + $0x64] sm:$0xf] %v1404
                  %v1406 = vld [vmem:[%s1376 + $0x38] sm:$0xf]
                  %1407 = vst [vmem:[%s1377 + $0x70] sm:$0xf] %v1406
                  %v1408 = vld [vmem:[%s1376 + $0x3c] sm:$0xf]
                  %1409 = vst [vmem:[%s1377 + $0x74] sm:$0xf] %v1408
                  %v1410 = vld [vmem:[%s1376 + $0x40] sm:$0xf]
                  %1411 = vst [vmem:[%s1377 + $0x80] sm:$0xf] %v1410
                  %v1412 = vld [vmem:[%s1376 + $0x44] sm:$0xf]
                  %1413 = vst [vmem:[%s1377 + $0x84] sm:$0xf] %v1412
                  %v1414 = vld [vmem:[%s1376 + $0x48] sm:$0xf]
                  %1415 = vst [vmem:[%s1377 + $0x90] sm:$0xf] %v1414
                  %v1416 = vld [vmem:[%s1376 + $0x4c] sm:$0xf]
                  %1417 = vst [vmem:[%s1377 + $0x94] sm:$0xf] %v1416
                  %v1418 = vld [vmem:[%s1376 + $0x50] sm:$0xf]
                  %1419 = vst [vmem:[%s1377 + $0xa0] sm:$0xf] %v1418
                  %v1420 = vld [vmem:[%s1376 + $0x54] sm:$0xf]
                  %1421 = vst [vmem:[%s1377 + $0xa4] sm:$0xf] %v1420
                  %v1422 = vld [vmem:[%s1376 + $0x58] sm:$0xf]
                  %1423 = vst [vmem:[%s1377 + $0xb0] sm:$0xf] %v1422
                  %v1424 = vld [vmem:[%s1376 + $0x5c] sm:$0xf]
                  %1425 = vst [vmem:[%s1377 + $0xb4] sm:$0xf] %v1424
                  %v1426 = vld [vmem:[%s1376 + $0x60] sm:$0xf]
                  %1427 = vst [vmem:[%s1377 + $0xc0] sm:$0xf] %v1426
                  %v1428 = vld [vmem:[%s1376 + $0x64] sm:$0xf]
                  %1429 = vst [vmem:[%s1377 + $0xc4] sm:$0xf] %v1428
                  %v1430 = vld [vmem:[%s1376 + $0x68] sm:$0xf]
                  %1431 = vst [vmem:[%s1377 + $0xd0] sm:$0xf] %v1430
                  %v1432 = vld [vmem:[%s1376 + $0x6c] sm:$0xf]
                  %1433 = vst [vmem:[%s1377 + $0xd4] sm:$0xf] %v1432
                  %v1434 = vld [vmem:[%s1376 + $0x70] sm:$0xf]
                  %1435 = vst [vmem:[%s1377 + $0xe0] sm:$0xf] %v1434
                  %v1436 = vld [vmem:[%s1376 + $0x74] sm:$0xf]
                  %1437 = vst [vmem:[%s1377 + $0xe4] sm:$0xf] %v1436
                  %v1438 = vld [vmem:[%s1376 + $0x78] sm:$0xf]
                  %1439 = vst [vmem:[%s1377 + $0xf0] sm:$0xf] %v1438
                  %v1440 = vld [vmem:[%s1376 + $0x7c] sm:$0xf]
                  %1441 = vst [vmem:[%s1377 + $0xf4] sm:$0xf] %v1440
                  %v1442 = vld [vmem:[%s1376 + $0x80] sm:$0xf]
                  %1443 = vst [vmem:[%s1377 + $0x100] sm:$0xf] %v1442
                  %v1444 = vld [vmem:[%s1376 + $0x84] sm:$0xf]
                  %1445 = vst [vmem:[%s1377 + $0x104] sm:$0xf] %v1444
                  %v1446 = vld [vmem:[%s1376 + $0x88] sm:$0xf]
                  %1447 = vst [vmem:[%s1377 + $0x110] sm:$0xf] %v1446
                  %v1448 = vld [vmem:[%s1376 + $0x8c] sm:$0xf]
                  %1449 = vst [vmem:[%s1377 + $0x114] sm:$0xf] %v1448
                  %v1450 = vld [vmem:[%s1376 + $0x90] sm:$0xf]
                  %1451 = vst [vmem:[%s1377 + $0x120] sm:$0xf] %v1450
                  %v1452 = vld [vmem:[%s1376 + $0x94] sm:$0xf]
                  %1453 = vst [vmem:[%s1377 + $0x124] sm:$0xf] %v1452
                  %v1454 = vld [vmem:[%s1376 + $0x98] sm:$0xf]
                  %1455 = vst [vmem:[%s1377 + $0x130] sm:$0xf] %v1454
                  %v1456 = vld [vmem:[%s1376 + $0x9c] sm:$0xf]
                  %1457 = vst [vmem:[%s1377 + $0x134] sm:$0xf] %v1456
                  %v1458 = vld [vmem:[%s1376 + $0xa0] sm:$0xf]
                  %1459 = vst [vmem:[%s1377 + $0x140] sm:$0xf] %v1458
                  %v1460 = vld [vmem:[%s1376 + $0xa4] sm:$0xf]
                  %1461 = vst [vmem:[%s1377 + $0x144] sm:$0xf] %v1460
                  %v1462 = vld [vmem:[%s1376 + $0xa8] sm:$0xf]
                  %1463 = vst [vmem:[%s1377 + $0x150] sm:$0xf] %v1462
                  %v1464 = vld [vmem:[%s1376 + $0xac] sm:$0xf]
                  %1465 = vst [vmem:[%s1377 + $0x154] sm:$0xf] %v1464
                  %v1466 = vld [vmem:[%s1376 + $0xb0] sm:$0xf]
                  %1467 = vst [vmem:[%s1377 + $0x160] sm:$0xf] %v1466
                  %v1468 = vld [vmem:[%s1376 + $0xb4] sm:$0xf]
                  %1469 = vst [vmem:[%s1377 + $0x164] sm:$0xf] %v1468
                  %v1470 = vld [vmem:[%s1376 + $0xb8] sm:$0xf]
                  %1471 = vst [vmem:[%s1377 + $0x170] sm:$0xf] %v1470
                  %v1472 = vld [vmem:[%s1376 + $0xbc] sm:$0xf]
                  %1473 = vst [vmem:[%s1377 + $0x174] sm:$0xf] %v1472
                  %v1474 = vld [vmem:[%s1376 + $0xc0] sm:$0xf]
                  %1475 = vst [vmem:[%s1377 + $0x180] sm:$0xf] %v1474
                  %v1476 = vld [vmem:[%s1376 + $0xc4] sm:$0xf]
                  %1477 = vst [vmem:[%s1377 + $0x184] sm:$0xf] %v1476
                  %v1478 = vld [vmem:[%s1376 + $0xc8] sm:$0xf]
                  %1479 = vst [vmem:[%s1377 + $0x190] sm:$0xf] %v1478
                  %v1480 = vld [vmem:[%s1376 + $0xcc] sm:$0xf]
                  %1481 = vst [vmem:[%s1377 + $0x194] sm:$0xf] %v1480
                  %v1482 = vld [vmem:[%s1376 + $0xd0] sm:$0xf]
                  %1483 = vst [vmem:[%s1377 + $0x1a0] sm:$0xf] %v1482
                  %v1484 = vld [vmem:[%s1376 + $0xd4] sm:$0xf]
                  %1485 = vst [vmem:[%s1377 + $0x1a4] sm:$0xf] %v1484
                  %v1486 = vld [vmem:[%s1376 + $0xd8] sm:$0xf]
                  %1487 = vst [vmem:[%s1377 + $0x1b0] sm:$0xf] %v1486
                  %v1488 = vld [vmem:[%s1376 + $0xdc] sm:$0xf]
                  %1489 = vst [vmem:[%s1377 + $0x1b4] sm:$0xf] %v1488
                  %v1490 = vld [vmem:[%s1376 + $0xe0] sm:$0xf]
                  %1491 = vst [vmem:[%s1377 + $0x1c0] sm:$0xf] %v1490
                  %v1492 = vld [vmem:[%s1376 + $0xe4] sm:$0xf]
                  %1493 = vst [vmem:[%s1377 + $0x1c4] sm:$0xf] %v1492
                  %v1494 = vld [vmem:[%s1376 + $0xe8] sm:$0xf]
                  %1495 = vst [vmem:[%s1377 + $0x1d0] sm:$0xf] %v1494
                  %v1496 = vld [vmem:[%s1376 + $0xec] sm:$0xf]
                  %1497 = vst [vmem:[%s1377 + $0x1d4] sm:$0xf] %v1496
                  %v1498 = vld [vmem:[%s1376 + $0xf0] sm:$0xf]
                  %1499 = vst [vmem:[%s1377 + $0x1e0] sm:$0xf] %v1498
                  %v1500 = vld [vmem:[%s1376 + $0xf4] sm:$0xf]
                  %1501 = vst [vmem:[%s1377 + $0x1e4] sm:$0xf] %v1500
                  %v1502 = vld [vmem:[%s1376 + $0xf8] sm:$0xf]
                  %1503 = vst [vmem:[%s1377 + $0x1f0] sm:$0xf] %v1502
                  %v1504 = vld [vmem:[%s1376 + $0xfc] sm:$0xf]
                  %1505 = vst [vmem:[%s1377 + $0x1f4] sm:$0xf] %v1504
                $region71: #{basic_deconv_forward.1} parent=58 // loop_footer
                  %s1375 = sadd.s32 1, %s1371
                $region72: #{basic_deconv_forward.1} parent=58 // loop_footer_branch
                  %1370 = sbr.rel target = $region68
                $region73: #{basic_deconv_forward.1} parent=58 // loop_exit
                  _
              $region59: #{basic_deconv_forward.1} parent=43 // pred_fallthru
                _
            $region44: #{basic_deconv_forward.1} parent=39 // pred_fallthru
              _
            // Predicated region
            $region45: #{basic_deconv_forward.1} parent=39 // pred_check
              _
            $region46: #{basic_deconv_forward.1} parent=39 // pred_check_branch
              %1221 = sbr.rel (0) target = $region48
            $region47: #{basic_deconv_forward.1} parent=39 // pred_region
              loop: start=0, step=1, limit=1
              $region49: #{basic_deconv_forward.1} parent=47 // loop_pre_header
                _
              $region50: #{basic_deconv_forward.1} parent=47 // loop_header
                %s1224 = sphi 0, %s1228
                %p1225 = scmp.ge.s32.totalorder %s1224, 1
                %s1229 = sphi %s1206, %s1206
                %s1230 = sphi %s1215, %s1215
              $region51: #{basic_deconv_forward.1} parent=47 // loop_header_branch
                %1227 = sbr.rel (%p1225) target = $region55
              $region52: #{basic_deconv_forward.1} parent=47 // loop_body
                %v1231 = vld [vmem:[%s1229] sm:$0xf]
                %1232 = vst [vmem:[%s1230] sm:$0xf] %v1231
                %v1233 = vld [vmem:[%s1229 + $0x4] sm:$0xf]
                %1234 = vst [vmem:[%s1230 + $0x4] sm:$0xf] %v1233
                %v1235 = vld [vmem:[%s1229 + $0x8] sm:$0xf]
                %1236 = vst [vmem:[%s1230 + $0x10] sm:$0xf] %v1235
                %v1237 = vld [vmem:[%s1229 + $0xc] sm:$0xf]
                %1238 = vst [vmem:[%s1230 + $0x14] sm:$0xf] %v1237
                %v1239 = vld [vmem:[%s1229 + $0x10] sm:$0xf]
                %1240 = vst [vmem:[%s1230 + $0x20] sm:$0xf] %v1239
                %v1241 = vld [vmem:[%s1229 + $0x14] sm:$0xf]
                %1242 = vst [vmem:[%s1230 + $0x24] sm:$0xf] %v1241
                %v1243 = vld [vmem:[%s1229 + $0x18] sm:$0xf]
                %1244 = vst [vmem:[%s1230 + $0x30] sm:$0xf] %v1243
                %v1245 = vld [vmem:[%s1229 + $0x1c] sm:$0xf]
                %1246 = vst [vmem:[%s1230 + $0x34] sm:$0xf] %v1245
                %v1247 = vld [vmem:[%s1229 + $0x20] sm:$0xf]
                %1248 = vst [vmem:[%s1230 + $0x40] sm:$0xf] %v1247
                %v1249 = vld [vmem:[%s1229 + $0x24] sm:$0xf]
                %1250 = vst [vmem:[%s1230 + $0x44] sm:$0xf] %v1249
                %v1251 = vld [vmem:[%s1229 + $0x28] sm:$0xf]
                %1252 = vst [vmem:[%s1230 + $0x50] sm:$0xf] %v1251
                %v1253 = vld [vmem:[%s1229 + $0x2c] sm:$0xf]
                %1254 = vst [vmem:[%s1230 + $0x54] sm:$0xf] %v1253
                %v1255 = vld [vmem:[%s1229 + $0x30] sm:$0xf]
                %1256 = vst [vmem:[%s1230 + $0x60] sm:$0xf] %v1255
                %v1257 = vld [vmem:[%s1229 + $0x34] sm:$0xf]
                %1258 = vst [vmem:[%s1230 + $0x64] sm:$0xf] %v1257
                %v1259 = vld [vmem:[%s1229 + $0x38] sm:$0xf]
                %1260 = vst [vmem:[%s1230 + $0x70] sm:$0xf] %v1259
                %v1261 = vld [vmem:[%s1229 + $0x3c] sm:$0xf]
                %1262 = vst [vmem:[%s1230 + $0x74] sm:$0xf] %v1261
                %v1263 = vld [vmem:[%s1229 + $0x40] sm:$0xf]
                %1264 = vst [vmem:[%s1230 + $0x80] sm:$0xf] %v1263
                %v1265 = vld [vmem:[%s1229 + $0x44] sm:$0xf]
                %1266 = vst [vmem:[%s1230 + $0x84] sm:$0xf] %v1265
                %v1267 = vld [vmem:[%s1229 + $0x48] sm:$0xf]
                %1268 = vst [vmem:[%s1230 + $0x90] sm:$0xf] %v1267
                %v1269 = vld [vmem:[%s1229 + $0x4c] sm:$0xf]
                %1270 = vst [vmem:[%s1230 + $0x94] sm:$0xf] %v1269
                %v1271 = vld [vmem:[%s1229 + $0x50] sm:$0xf]
                %1272 = vst [vmem:[%s1230 + $0xa0] sm:$0xf] %v1271
                %v1273 = vld [vmem:[%s1229 + $0x54] sm:$0xf]
                %1274 = vst [vmem:[%s1230 + $0xa4] sm:$0xf] %v1273
                %v1275 = vld [vmem:[%s1229 + $0x58] sm:$0xf]
                %1276 = vst [vmem:[%s1230 + $0xb0] sm:$0xf] %v1275
                %v1277 = vld [vmem:[%s1229 + $0x5c] sm:$0xf]
                %1278 = vst [vmem:[%s1230 + $0xb4] sm:$0xf] %v1277
                %v1279 = vld [vmem:[%s1229 + $0x60] sm:$0xf]
                %1280 = vst [vmem:[%s1230 + $0xc0] sm:$0xf] %v1279
                %v1281 = vld [vmem:[%s1229 + $0x64] sm:$0xf]
                %1282 = vst [vmem:[%s1230 + $0xc4] sm:$0xf] %v1281
                %v1283 = vld [vmem:[%s1229 + $0x68] sm:$0xf]
                %1284 = vst [vmem:[%s1230 + $0xd0] sm:$0xf] %v1283
                %v1285 = vld [vmem:[%s1229 + $0x6c] sm:$0xf]
                %1286 = vst [vmem:[%s1230 + $0xd4] sm:$0xf] %v1285
                %v1287 = vld [vmem:[%s1229 + $0x70] sm:$0xf]
                %1288 = vst [vmem:[%s1230 + $0xe0] sm:$0xf] %v1287
                %v1289 = vld [vmem:[%s1229 + $0x74] sm:$0xf]
                %1290 = vst [vmem:[%s1230 + $0xe4] sm:$0xf] %v1289
                %v1291 = vld [vmem:[%s1229 + $0x78] sm:$0xf]
                %1292 = vst [vmem:[%s1230 + $0xf0] sm:$0xf] %v1291
                %v1293 = vld [vmem:[%s1229 + $0x7c] sm:$0xf]
                %1294 = vst [vmem:[%s1230 + $0xf4] sm:$0xf] %v1293
                %v1295 = vld [vmem:[%s1229 + $0x80] sm:$0xf]
                %1296 = vst [vmem:[%s1230 + $0x100] sm:$0xf] %v1295
                %v1297 = vld [vmem:[%s1229 + $0x84] sm:$0xf]
                %1298 = vst [vmem:[%s1230 + $0x104] sm:$0xf] %v1297
                %v1299 = vld [vmem:[%s1229 + $0x88] sm:$0xf]
                %1300 = vst [vmem:[%s1230 + $0x110] sm:$0xf] %v1299
                %v1301 = vld [vmem:[%s1229 + $0x8c] sm:$0xf]
                %1302 = vst [vmem:[%s1230 + $0x114] sm:$0xf] %v1301
                %v1303 = vld [vmem:[%s1229 + $0x90] sm:$0xf]
                %1304 = vst [vmem:[%s1230 + $0x120] sm:$0xf] %v1303
                %v1305 = vld [vmem:[%s1229 + $0x94] sm:$0xf]
                %1306 = vst [vmem:[%s1230 + $0x124] sm:$0xf] %v1305
                %v1307 = vld [vmem:[%s1229 + $0x98] sm:$0xf]
                %1308 = vst [vmem:[%s1230 + $0x130] sm:$0xf] %v1307
                %v1309 = vld [vmem:[%s1229 + $0x9c] sm:$0xf]
                %1310 = vst [vmem:[%s1230 + $0x134] sm:$0xf] %v1309
                %v1311 = vld [vmem:[%s1229 + $0xa0] sm:$0xf]
                %1312 = vst [vmem:[%s1230 + $0x140] sm:$0xf] %v1311
                %v1313 = vld [vmem:[%s1229 + $0xa4] sm:$0xf]
                %1314 = vst [vmem:[%s1230 + $0x144] sm:$0xf] %v1313
                %v1315 = vld [vmem:[%s1229 + $0xa8] sm:$0xf]
                %1316 = vst [vmem:[%s1230 + $0x150] sm:$0xf] %v1315
                %v1317 = vld [vmem:[%s1229 + $0xac] sm:$0xf]
                %1318 = vst [vmem:[%s1230 + $0x154] sm:$0xf] %v1317
                %v1319 = vld [vmem:[%s1229 + $0xb0] sm:$0xf]
                %1320 = vst [vmem:[%s1230 + $0x160] sm:$0xf] %v1319
                %v1321 = vld [vmem:[%s1229 + $0xb4] sm:$0xf]
                %1322 = vst [vmem:[%s1230 + $0x164] sm:$0xf] %v1321
                %v1323 = vld [vmem:[%s1229 + $0xb8] sm:$0xf]
                %1324 = vst [vmem:[%s1230 + $0x170] sm:$0xf] %v1323
                %v1325 = vld [vmem:[%s1229 + $0xbc] sm:$0xf]
                %1326 = vst [vmem:[%s1230 + $0x174] sm:$0xf] %v1325
                %v1327 = vld [vmem:[%s1229 + $0xc0] sm:$0xf]
                %1328 = vst [vmem:[%s1230 + $0x180] sm:$0xf] %v1327
                %v1329 = vld [vmem:[%s1229 + $0xc4] sm:$0xf]
                %1330 = vst [vmem:[%s1230 + $0x184] sm:$0xf] %v1329
                %v1331 = vld [vmem:[%s1229 + $0xc8] sm:$0xf]
                %1332 = vst [vmem:[%s1230 + $0x190] sm:$0xf] %v1331
                %v1333 = vld [vmem:[%s1229 + $0xcc] sm:$0xf]
                %1334 = vst [vmem:[%s1230 + $0x194] sm:$0xf] %v1333
                %v1335 = vld [vmem:[%s1229 + $0xd0] sm:$0xf]
                %1336 = vst [vmem:[%s1230 + $0x1a0] sm:$0xf] %v1335
                %v1337 = vld [vmem:[%s1229 + $0xd4] sm:$0xf]
                %1338 = vst [vmem:[%s1230 + $0x1a4] sm:$0xf] %v1337
                %v1339 = vld [vmem:[%s1229 + $0xd8] sm:$0xf]
                %1340 = vst [vmem:[%s1230 + $0x1b0] sm:$0xf] %v1339
                %v1341 = vld [vmem:[%s1229 + $0xdc] sm:$0xf]
                %1342 = vst [vmem:[%s1230 + $0x1b4] sm:$0xf] %v1341
                %v1343 = vld [vmem:[%s1229 + $0xe0] sm:$0xf]
                %1344 = vst [vmem:[%s1230 + $0x1c0] sm:$0xf] %v1343
                %v1345 = vld [vmem:[%s1229 + $0xe4] sm:$0xf]
                %1346 = vst [vmem:[%s1230 + $0x1c4] sm:$0xf] %v1345
                %v1347 = vld [vmem:[%s1229 + $0xe8] sm:$0xf]
                %1348 = vst [vmem:[%s1230 + $0x1d0] sm:$0xf] %v1347
                %v1349 = vld [vmem:[%s1229 + $0xec] sm:$0xf]
                %1350 = vst [vmem:[%s1230 + $0x1d4] sm:$0xf] %v1349
                %v1351 = vld [vmem:[%s1229 + $0xf0] sm:$0xf]
                %1352 = vst [vmem:[%s1230 + $0x1e0] sm:$0xf] %v1351
                %v1353 = vld [vmem:[%s1229 + $0xf4] sm:$0xf]
                %1354 = vst [vmem:[%s1230 + $0x1e4] sm:$0xf] %v1353
                %v1355 = vld [vmem:[%s1229 + $0xf8] sm:$0xf]
                %1356 = vst [vmem:[%s1230 + $0x1f0] sm:$0xf] %v1355
                %v1357 = vld [vmem:[%s1229 + $0xfc] sm:$0xf]
                %1358 = vst [vmem:[%s1230 + $0x1f4] sm:$0xf] %v1357
              $region53: #{basic_deconv_forward.1} parent=47 // loop_footer
                %s1228 = sadd.s32 1, %s1224
              $region54: #{basic_deconv_forward.1} parent=47 // loop_footer_branch
                %1223 = sbr.rel target = $region50
              $region55: #{basic_deconv_forward.1} parent=47 // loop_exit
                _
            $region48: #{basic_deconv_forward.1} parent=39 // pred_fallthru
              _
          $region40: #{basic_deconv_forward.1} parent=35 // pred_fallthru
            _
          %1506 = vnop
        $region36: #{basic_deconv_forward.1} parent=31 // pred_fallthru
          _
      $region32: #{basic_deconv_forward.1} parent=5 // pred_fallthru
        _
      %p1507 = scmp.le.s32.totalorder 2, %s9
      // Predicated region
      $region74: #{basic_deconv_forward.1} parent=5 // pred_check
        %p1508 = pneg %p1507
      $region75: #{basic_deconv_forward.1} parent=5 // pred_check_branch
        %1510 = sbr.rel (%p1508) target = $region77
      $region76: #{basic_deconv_forward.1} parent=5 // pred_region
        %s1511 = ssub.s32 %s9, 2
        // Predicated region
        $region78: #{basic_deconv_forward.1} parent=76 // pred_check
          %p1512 = pneg %p120
        $region79: #{basic_deconv_forward.1} parent=76 // pred_check_branch
          %1514 = sbr.rel (%p1512) target = $region81
        $region80: #{basic_deconv_forward.1} parent=76 // pred_region
          %s1515 = sand.u32 %s105, 1
          %s1516 = sand.u32 %s105, 1
          %s1517 = smul.addr %s1516, 256
          %s1518 = scalar_lea.vmem [#allocation2], %s1517
        $region81: #{basic_deconv_forward.1} parent=76 // pred_fallthru
          _
      $region77: #{basic_deconv_forward.1} parent=5 // pred_fallthru
        _
    $region6: #{basic_deconv_forward.1} parent=1 // loop_footer
      %s13 = sadd.s32 1, %s9
    $region7: #{basic_deconv_forward.1} parent=1 // loop_footer_branch
      %8 = sbr.rel target = $region3
    $region8: #{basic_deconv_forward.1} parent=1 // loop_exit
      _

</llo_original>
